<compile_context>
chip_gen: v5e
topology: v5e:2x2
jax: 0.10.0
libtpu: 0.0.40
codegen_flags: <defaults>
</compile_context>

<pallas_src>
import functools
import math

import jax
import jax.numpy as jnp
from jax import lax
from jax.experimental import pallas as pl
from jax.experimental.pallas import tpu as pltpu


def _round_up(x, m):
    return (x + m - 1) // m * m


# ----------------------------------------------------------------------------
# Kernel
# ----------------------------------------------------------------------------
def _gmm_kernel(off_ref, gid_ref, mid_ref, nreal_ref, x_ref, w_ref, *refs,
                tm, has_bias):
    """Grid = (n_tiles, work_items, k_tiles); k innermost (reduction)."""
    if has_bias:
        b_ref, o_ref, acc_ref = refs
    else:
        b_ref = None
        o_ref, acc_ref = refs

    t = pl.program_id(1)
    k = pl.program_id(2)
    nk = pl.num_programs(2)

    is_real = t < nreal_ref[0]          # trailing padded work items do nothing
    g = gid_ref[t]                      # expert for this work item
    m_tile = mid_ref[t]                 # output row tile for this work item
    prev_m = mid_ref[jnp.maximum(t - 1, 0)]
    first_visit = (t == 0) | (m_tile != prev_m)

    # Fresh output row tile -> reset the f32 accumulator.
    @pl.when(is_real & first_visit & (k == 0))
    def _init():
        acc_ref[...] = jnp.zeros_like(acc_ref)

    start = off_ref[g]
    end = off_ref[g + 1]
    tile_start = m_tile * tm
    tile_end = tile_start + tm

    overlaps = (start < end) & (tile_start < end) & (tile_end > start)
    has_work = is_real & overlaps
    # Common case: the whole row tile belongs to this expert -> no row mask.
    full_tile = (tile_start >= start) & (tile_end <= end)

    @pl.when(has_work & full_tile)
    def _compute_full():
        acc_ref[...] += jnp.dot(x_ref[...], w_ref[0],
                                preferred_element_type=jnp.float32)

    @pl.when(has_work & jnp.logical_not(full_tile))
    def _compute_partial():             # boundary tile: mask foreign rows only
        rows = tile_start + lax.broadcasted_iota(jnp.int32, (tm, 1), 0)
        row_mask = (rows >= start) & (rows < end)
        xv = jnp.where(row_mask, x_ref[...], jnp.zeros_like(x_ref[...]))
        acc_ref[...] += jnp.dot(xv, w_ref[0],
                                preferred_element_type=jnp.float32)

    # Finalize only for real work items (padded duplicates must not re-add
    # bias or rewrite the output block).
    @pl.when(is_real & (k == nk - 1))
    def _finalize():
        if has_bias:
            rows = tile_start + lax.broadcasted_iota(jnp.int32, (tm, 1), 0)
            row_mask = (rows >= start) & (rows < end)
            acc_ref[...] += jnp.where(row_mask,
                                      b_ref[0].astype(jnp.float32),
                                      jnp.float32(0.0))
        o_ref[...] = acc_ref[...].astype(o_ref.dtype)


# ----------------------------------------------------------------------------
# Host-side (plain JAX) metadata: work-item -> (expert, output row tile)
# ----------------------------------------------------------------------------
def _make_group_metadata(expert_size, num_work, tm, grid_m, num_experts):
    sizes = expert_size.astype(jnp.int32)
    offsets = jnp.concatenate(
        [jnp.zeros((1,), jnp.int32), jnp.cumsum(sizes, dtype=jnp.int32)])
    first_tile = offsets[:-1] // tm
    last_tile_excl = (offsets[1:] + tm - 1) // tm
    tiles_per_group = jnp.where(sizes > 0, last_tile_excl - first_tile, 0)
    work_start = jnp.concatenate(
        [jnp.zeros((1,), jnp.int32),
         jnp.cumsum(tiles_per_group, dtype=jnp.int32)])
    num_real = work_start[-1]                      # <= grid_m + E - 1

    t_idx = jnp.arange(num_work, dtype=jnp.int32)
    # Padded work items (t >= num_real) duplicate the LAST real (expert, tile)
    # pair so their block indices equal the preceding grid step's -> Pallas
    # issues no new DMAs / output writebacks for them.  They are gated
    # in-kernel via the num_real scalar.
    t_eff = jnp.maximum(jnp.minimum(t_idx, num_real - 1), 0)
    g_of_t = jnp.searchsorted(work_start, t_eff, side="right") - 1
    g_of_t = jnp.clip(g_of_t, 0, num_experts - 1).astype(jnp.int32)
    m_of_t = first_tile[g_of_t] + (t_eff - work_start[g_of_t])
    # Safety clamp: keeps block indices in range even if sum(expert_size)
    # exceeds the padded row range (silent truncation, as before).
    m_of_t = jnp.clip(m_of_t, 0, grid_m - 1).astype(jnp.int32)
    num_real_arr = jnp.reshape(num_real, (1,)).astype(jnp.int32)
    return offsets, g_of_t, m_of_t, num_real_arr


# ----------------------------------------------------------------------------
# Tiling / weight pre-formatting
# ----------------------------------------------------------------------------
def _choose_tiles(K, N, tm, tk, tn):
    tm = max(16, _round_up(tm, 16))      # multiple of 16 (bf16 sublane packing)
    tk = min(_round_up(tk, 128), _round_up(K, 128))
    tn = min(_round_up(tn, 128), _round_up(N, 128))
    K_pad = _round_up(K, tk)
    N_pad = _round_up(N, tn)
    # Keep the grid's only "parallel" axis >= 2 entries when possible so both
    # v7x TensorCores get work (n tiles stay multiples of 128 lanes).
    if N_pad // tn < 2 and N_pad % 256 == 0:
        tn = N_pad // 2
    return tm, tk, tn, K_pad, N_pad


def preformat_expert_weights(w, b=None, *, tk, tn, K_pad, N_pad,
                             compute_dtype=jnp.bfloat16):
    """Cast + zero-pad expert weights once (avoids per-call HBM copies)."""
    E, K, N = w.shape
    del tk, tn
    w_c = w.astype(compute_dtype)
    if K_pad != K or N_pad != N:
        w_c = jnp.pad(w_c, ((0, 0), (0, K_pad - K), (0, N_pad - N)))
    b_c = None
    if b is not None:
        b_c = b.astype(jnp.float32).reshape(E, 1, N)
        if N_pad != N:
            b_c = jnp.pad(b_c, ((0, 0), (0, 0), (0, N_pad - N)))
    return w_c, b_c


# ----------------------------------------------------------------------------
# Core pallas_call (assumes pre-padded / pre-cast operands)
# ----------------------------------------------------------------------------
def _grouped_matmul(x_p, expert_size, w_p, b_p, *, T, N, tm, tk, tn,
                    out_dtype, interpret=False):
    rows_pad, K_pad = x_p.shape
    E, Kw, N_pad = w_p.shape
    assert Kw == K_pad
    assert rows_pad % tm == 0 and K_pad % tk == 0 and N_pad % tn == 0
    has_bias = b_p is not None

    grid_m = rows_pad // tm
    num_work = grid_m + E                    # static upper bound on work items
    offsets, group_ids, m_tile_ids, num_real = _make_group_metadata(
        expert_size, num_work, tm, grid_m, E)

    grid = (N_pad // tn, num_work, K_pad // tk)
    last_k = K_pad // tk - 1

    # Padded work items pin k to the last real step's k so every block index
    # repeats and no DMA is issued for them.
    def x_map(n, t, k, off, gid, mid, nreal):
        return (mid[t], jnp.where(t < nreal[0], k, last_k))

    def w_map(n, t, k, off, gid, mid, nreal):
        return (gid[t], jnp.where(t < nreal[0], k, last_k), n)

    def b_map(n, t, k, off, gid, mid, nreal):
        return (gid[t], 0, n)

    def o_map(n, t, k, off, gid, mid, nreal):
        return (mid[t], n)

    in_specs = [
        pl.BlockSpec((tm, tk), x_map),
        # NOTE: on v6e with spare VMEM, pipeline_mode=pl.Buffered(3) on the w
        # spec can hide DMA latency for small tk*tn tiles.
        pl.BlockSpec((1, tk, tn), w_map),
    ]
    call_args = [offsets, group_ids, m_tile_ids, num_real, x_p, w_p]
    if has_bias:
        in_specs.append(pl.BlockSpec((1, 1, tn), b_map))
        call_args.append(b_p)

    out_specs = pl.BlockSpec((tm, tn), o_map)

    grid_spec = pltpu.PrefetchScalarGridSpec(
        num_scalar_prefetch=4,
        grid=grid,
        in_specs=in_specs,
        out_specs=out_specs,
        scratch_shapes=[pltpu.VMEM((tm, tn), jnp.float32)],
    )

    kernel = functools.partial(_gmm_kernel, tm=tm, has_bias=has_bias)

    comp_isz = jnp.dtype(x_p.dtype).itemsize
    out_isz = jnp.dtype(out_dtype).itemsize
    n_tiles = N_pad // tn
    cost = pl.CostEstimate(
        flops=int(2 * T * K_pad * N),
        transcendentals=0,
        bytes_accessed=int(
            n_tiles * rows_pad * K_pad * comp_isz       # x re-fetched per n-tile
            + num_work * K_pad * N_pad * comp_isz       # per-work-item w stream
            + rows_pad * N_pad * out_isz                # output writeback
            + (num_work * n_tiles * tn * 4 if has_bias else 0)),
    )

    # Demand-driven VMEM limit: double-buffered x/w/out tiles + f32 accumulator
    # with 2x headroom; floored at the 32 MiB scoped default and capped by the
    # physical VMEM of the current generation (64 MiB on v7x, 128 MiB v5e/v6e).
    vmem_need = (2 * tm * tk * comp_isz + 2 * tk * tn * comp_isz
                 + 2 * tm * tn * out_isz + tm * tn * 4
                 + (2 * tn * 4 if has_bias else 0))
    phys_vmem = 64 * 1024 * 1024
    try:
        info = pltpu.get_tpu_info()
        phys_vmem = int(getattr(info, "vmem_capacity_bytes", phys_vmem)
                        or phys_vmem)
    except Exception:
        pass
    vmem_limit = int(min(max(2 * vmem_need, 32 * 1024 * 1024),
                         int(phys_vmem * 0.75)))

    out = pl.pallas_call(
        kernel,
        out_shape=jax.ShapeDtypeStruct((rows_pad, N_pad), out_dtype),
        grid_spec=grid_spec,
        compiler_params=pltpu.CompilerParams(
            # n-tile axis is independent -> shards across v7x's 2 TensorCores.
            # t shares accumulators across boundary tiles (must stay
            # sequential); k is the reduction.
            dimension_semantics=("parallel", "arbitrary", "arbitrary"),
            vmem_limit_bytes=vmem_limit,
        ),
        cost_estimate=cost,
        interpret=interpret,
    )(*call_args)

    # NOTE: if sum(expert_size) < T, rows beyond the covered range are not
    # defined by the PyTorch reference either (it would return fewer rows).
    return out[:T, :N]


# ----------------------------------------------------------------------------
# Convenience wrapper (pads/casts per call — prefer the ParallelExperts class)
# ----------------------------------------------------------------------------
def parallel_experts_forward(inputs, expert_size, w, b=None, *,
                             tm=256, tk=256, tn=256,
                             compute_dtype=jnp.bfloat16, out_dtype=None):
    """Pallas equivalent of ParallelLinear.forward (inference path)."""
    T, K = inputs.shape
    E, Kw, N = w.shape
    assert Kw == K
    out_dtype = inputs.dtype if out_dtype is None else out_dtype

    tm, tk, tn, K_pad, N_pad = _choose_tiles(K, N, tm, tk, tn)
    grid_m = max(1, (T + tm - 1) // tm)
    rows_pad = grid_m * tm

    x_p = inputs.astype(compute_dtype)
    if rows_pad != T or K_pad != K:
        x_p = jnp.pad(x_p, ((0, rows_pad - T), (0, K_pad - K)))

    if w.dtype == compute_dtype and K_pad == K and N_pad == N:
        w_p = w
        b_p = None if b is None else b.astype(jnp.float32).reshape(E, 1, N)
    else:
        w_p, b_p = preformat_expert_weights(
            w, b, tk=tk, tn=tn, K_pad=K_pad, N_pad=N_pad,
            compute_dtype=compute_dtype)

    return _grouped_matmul(x_p, expert_size, w_p, b_p, T=T, N=N,
                           tm=tm, tk=tk, tn=tn, out_dtype=out_dtype)


class ParallelExperts:
    """JAX mirror of the PyTorch ParallelExperts module (forward only).

    Weights are cast to the MXU compute dtype and zero-padded to tile
    multiples ONCE at construction, so there are no per-call HBM weight copies.
    """

    def __init__(self, num_experts, input_size, output_size, bias=False,
                 key=None, tm=256, tk=256, tn=256,
                 compute_dtype=jnp.bfloat16, out_dtype=jnp.float32):
        if key is None:
            key = jax.random.PRNGKey(0)
        std = math.sqrt(2.0 / float(input_size + output_size))
        a = math.sqrt(3.0) * std
        self.w = jax.random.uniform(
            key, (num_experts, input_size, output_size),
            dtype=jnp.float32, minval=-a, maxval=a)
        self.b = (jnp.zeros((num_experts, output_size), jnp.float32)
                  if bias else None)
        self.input_size = input_size
        self.output_size = output_size
        self.compute_dtype = compute_dtype
        self.out_dtype = out_dtype
        self.tm, self.tk, self.tn, self.K_pad, self.N_pad = _choose_tiles(
            input_size, output_size, tm, tk, tn)
        self.w_padded, self.b_padded = preformat_expert_weights(
            self.w, self.b, tk=self.tk, tn=self.tn,
            K_pad=self.K_pad, N_pad=self.N_pad, compute_dtype=compute_dtype)

    def __call__(self, inputs, expert_size):
        T, K = inputs.shape
        assert K == self.input_size
        grid_m = max(1, (T + self.tm - 1) // self.tm)
        rows_pad = grid_m * self.tm
        x_p = inputs.astype(self.compute_dtype)
        if rows_pad != T or self.K_pad != K:
            x_p = jnp.pad(x_p, ((0, rows_pad - T), (0, self.K_pad - K)))
        return _grouped_matmul(
            x_p, expert_size, self.w_padded, self.b_padded,
            T=T, N=self.output_size, tm=self.tm, tk=self.tk, tn=self.tn,
            out_dtype=self.out_dtype)


# ----------------------------------------------------------------------------
# Reference + demo
# ----------------------------------------------------------------------------
def _reference(inputs, expert_size, w, b=None):
    """Pure-JAX reference matching the PyTorch per-expert loop."""
    sizes = [int(s) for s in expert_size]
    outs, start = [], 0
    for i, s in enumerate(sizes):
        x_i = inputs[start:start + s]
        o_i = x_i @ w[i]
        if b is not None:
            o_i = o_i + b[i]
        outs.append(o_i)
        start += s
    return jnp.concatenate(outs, axis=0)


if __name__ == "__main__":
    key = jax.random.PRNGKey(0)
    k_in, k_w, k_b = jax.random.split(key, 3)

    num_experts, input_size, output_size = 4, 128, 256
    T = 160
    inputs = jax.random.normal(k_in, (T, input_size), dtype=jnp.float32)

    # Reference operands use the same bf16 cast the MXU sees (f32 accumulation).
    x_ref32 = inputs.astype(jnp.bfloat16).astype(jnp.float32)

    # --- 1) Module path (weights pre-cast/padded once, default big tiles) ----
    # Empty expert + three experts sharing one row tile (boundary accumulation).
    expert_size_a = jnp.array([50, 0, 70, 40], dtype=jnp.int32)   # sums to T
    module = ParallelExperts(num_experts, input_size, output_size,
                             bias=False, key=k_w)
    out = jax.block_until_ready(module(inputs, expert_size_a))
    assert out.shape == (T, output_size)

    w_ref32 = module.w.astype(jnp.bfloat16).astype(jnp.float32)
    ref = _reference(x_ref32, expert_size_a, w_ref32, None)
    assert jnp.allclose(out, ref, atol=1e-2, rtol=1e-2), "mismatch (no bias)"

    # --- 2) Functional path with bias, small tm: exercises full tiles, -------
    #         boundary tiles, empty expert, padded work items, bias masking.
    expert_size_b = jnp.array([64, 0, 70, 26], dtype=jnp.int32)   # sums to T
    bias = 0.1 * jax.random.normal(k_b, (num_experts, output_size), jnp.float32)
    out_b = parallel_experts_forward(inputs, expert_size_b, module.w, bias,
                                     tm=64, tk=128, tn=128)
    out_b = jax.block_until_ready(out_b)
    ref_b = _reference(x_ref32, expert_size_b, w_ref32, bias)
    assert jnp.allclose(out_b, ref_b, atol=1e-2, rtol=1e-2), "mismatch (bias)"

    print("KERNEL_OK")
</pallas_src>

<mosaic_0001>
module attributes {stable_mosaic.version = 11 : i64} {
  func.func @_gmm_kernel(%arg0: i32, %arg1: i32, %arg2: i32, %arg3: memref<5xi32, #tpu.memory_space<smem>>, %arg4: memref<5xi32, #tpu.memory_space<smem>>, %arg5: memref<5xi32, #tpu.memory_space<smem>>, %arg6: memref<1xi32, #tpu.memory_space<smem>>, %arg7: memref<256x128xbf16, #tpu.memory_space<vmem>>, %arg8: memref<1x128x128xbf16, #tpu.memory_space<vmem>>, %arg9: memref<256x128xf32, #tpu.memory_space<vmem>>, %arg10: memref<256x128xf32, #tpu.memory_space<vmem>>) attributes {dimension_semantics = [#tpu.dimension_semantics<parallel>, #tpu.dimension_semantics<arbitrary>, #tpu.dimension_semantics<arbitrary>], iteration_bounds = array<i64: 2, 5, 1>, scalar_prefetch = 4 : i64, scratch_operands = 1 : i64, tpu.core_type = #tpu.core_type<tc>, window_params = [{transform_indices = @transform_0, window_bounds = array<i64: 256, 128>}, {transform_indices = @transform_1, window_bounds = array<i64: 1, 128, 128>}, {transform_indices = @transform_2, window_bounds = array<i64: 256, 128>}]} {
    %c0 = arith.constant 0 : index
    %0 = memref.load %arg6[%c0] : memref<1xi32, #tpu.memory_space<smem>>
    %1 = arith.cmpi slt, %arg1, %0 : i32
    %2 = arith.index_cast %arg1 : i32 to index
    %3 = memref.load %arg4[%2] : memref<5xi32, #tpu.memory_space<smem>>
    %4 = arith.index_cast %arg1 : i32 to index
    %5 = memref.load %arg5[%4] : memref<5xi32, #tpu.memory_space<smem>>
    %c1_i32 = arith.constant 1 : i32
    %6 = arith.subi %arg1, %c1_i32 : i32
    %c0_i32 = arith.constant 0 : i32
    %7 = arith.maxsi %6, %c0_i32 : i32
    %8 = arith.index_cast %7 : i32 to index
    %9 = memref.load %arg5[%8] : memref<5xi32, #tpu.memory_space<smem>>
    %c0_i32_0 = arith.constant 0 : i32
    %10 = arith.cmpi eq, %arg1, %c0_i32_0 : i32
    %11 = arith.cmpi ne, %5, %9 : i32
    %12 = arith.ori %10, %11 : i1
    %13 = arith.andi %1, %12 : i1
    %c0_i32_1 = arith.constant 0 : i32
    %14 = arith.cmpi eq, %arg2, %c0_i32_1 : i32
    %15 = arith.andi %13, %14 : i1
    %16 = arith.extui %15 : i1 to i32
    %c0_i32_2 = arith.constant 0 : i32
    %17 = arith.cmpi ne, %16, %c0_i32_2 : i32
    scf.if %17 {
      %cst = arith.constant 0.000000e+00 : f32
      %45 = vector.broadcast %cst : f32 to vector<256x128xf32>
      %c0_9 = arith.constant 0 : index
      %c0_10 = arith.constant 0 : index
      %46 = vector.load %arg10[%c0_9, %c0_10] : memref<256x128xf32, #tpu.memory_space<vmem>>, vector<256x128xf32>
      tpu.vector_store %arg10[%c0_9, %c0_10], %45 {strides = array<i32>} : memref<256x128xf32, #tpu.memory_space<vmem>>, vector<256x128xf32>,
    } else {
    }
    %18 = arith.index_cast %3 : i32 to index
    %19 = memref.load %arg3[%18] : memref<5xi32, #tpu.memory_space<smem>>
    %c1_i32_3 = arith.constant 1 : i32
    %20 = arith.addi %3, %c1_i32_3 : i32
    %21 = arith.index_cast %20 : i32 to index
    %22 = memref.load %arg3[%21] : memref<5xi32, #tpu.memory_space<smem>>
    %c256_i32 = arith.constant 256 : i32
    %23 = arith.muli %5, %c256_i32 : i32
    %c256_i32_4 = arith.constant 256 : i32
    %24 = arith.addi %23, %c256_i32_4 : i32
    %25 = arith.cmpi slt, %19, %22 : i32
    %26 = arith.cmpi slt, %23, %22 : i32
    %27 = arith.andi %25, %26 : i1
    %28 = arith.cmpi sgt, %24, %19 : i32
    %29 = arith.andi %27, %28 : i1
    %30 = arith.andi %1, %29 : i1
    %31 = arith.cmpi sge, %23, %19 : i32
    %32 = arith.cmpi sle, %24, %22 : i32
    %33 = arith.andi %31, %32 : i1
    %34 = arith.andi %30, %33 : i1
    %35 = arith.extui %34 : i1 to i32
    %c0_i32_5 = arith.constant 0 : i32
    %36 = arith.cmpi ne, %35, %c0_i32_5 : i32
    scf.if %36 {
      %c0_9 = arith.constant 0 : index
      %c0_10 = arith.constant 0 : index
      %45 = vector.load %arg10[%c0_9, %c0_10] : memref<256x128xf32, #tpu.memory_space<vmem>>, vector<256x128xf32>
      %c0_11 = arith.constant 0 : index
      %c0_12 = arith.constant 0 : index
      %46 = vector.load %arg7[%c0_11, %c0_12] : memref<256x128xbf16, #tpu.memory_space<vmem>>, vector<256x128xbf16>
      %c0_13 = arith.constant 0 : index
      %c0_14 = arith.constant 0 : index
      %c0_15 = arith.constant 0 : index
      %47 = vector.load %arg8[%c0_13, %c0_14, %c0_15] : memref<1x128x128xbf16, #tpu.memory_space<vmem>>, vector<1x128x128xbf16>
      %48 = vector.shape_cast %47 : vector<1x128x128xbf16> to vector<128x128xbf16>
      %cst = arith.constant dense<0.000000e+00> : vector<256x128xf32>
      %49 = tpu.matmul %46, %48, %cst {dimension_numbers = #tpu.dot_dimension_numbers<[1], [0], [0], [1], [0, 0, 1, 1], [], []>} : vector<256x128xbf16>, vector<128x128xbf16>, vector<256x128xf32> -> vector<256x128xf32>
      %50 = arith.addf %45, %49 : vector<256x128xf32>
      %c0_16 = arith.constant 0 : index
      %c0_17 = arith.constant 0 : index
      %51 = vector.load %arg10[%c0_16, %c0_17] : memref<256x128xf32, #tpu.memory_space<vmem>>, vector<256x128xf32>
      tpu.vector_store %arg10[%c0_16, %c0_17], %50 {strides = array<i32>} : memref<256x128xf32, #tpu.memory_space<vmem>>, vector<256x128xf32>,
    } else {
    }
    %true = arith.constant true
    %37 = arith.xori %33, %true : i1
    %38 = arith.andi %30, %37 : i1
    %39 = arith.extui %38 : i1 to i32
    %c0_i32_6 = arith.constant 0 : i32
    %40 = arith.cmpi ne, %39, %c0_i32_6 : i32
    scf.if %40 {
      %45 = tpu.iota {dimensions = array<i32: 0>} : vector<256x1xi32>
      %46 = vector.broadcast %23 : i32 to vector<256x1xi32>
      %47 = arith.addi %46, %45 : vector<256x1xi32>
      %48 = vector.broadcast %19 : i32 to vector<256x1xi32>
      %49 = arith.cmpi sge, %47, %48 : vector<256x1xi32>
      %50 = vector.broadcast %22 : i32 to vector<256x1xi32>
      %51 = arith.cmpi slt, %47, %50 : vector<256x1xi32>
      %52 = arith.andi %49, %51 : vector<256x1xi1>
      %c0_9 = arith.constant 0 : index
      %c0_10 = arith.constant 0 : index
      %53 = vector.load %arg7[%c0_9, %c0_10] : memref<256x128xbf16, #tpu.memory_space<vmem>>, vector<256x128xbf16>
      %cst = arith.constant 0.000000e+00 : bf16
      %54 = vector.broadcast %cst : bf16 to vector<256x128xbf16>
      %55 = vector.shape_cast %52 : vector<256x1xi1> to vector<256x1xi1>
      %56 = vector.broadcast %55 : vector<256x1xi1> to vector<256x128xi1>
      %57 = arith.select %56, %53, %54 : vector<256x128xi1>, vector<256x128xbf16>
      %c0_11 = arith.constant 0 : index
      %c0_12 = arith.constant 0 : index
      %58 = vector.load %arg10[%c0_11, %c0_12] : memref<256x128xf32, #tpu.memory_space<vmem>>, vector<256x128xf32>
      %c0_13 = arith.constant 0 : index
      %c0_14 = arith.constant 0 : index
      %c0_15 = arith.constant 0 : index
      %59 = vector.load %arg8[%c0_13, %c0_14, %c0_15] : memref<1x128x128xbf16, #tpu.memory_space<vmem>>, vector<1x128x128xbf16>
      %60 = vector.shape_cast %59 : vector<1x128x128xbf16> to vector<128x128xbf16>
      %cst_16 = arith.constant dense<0.000000e+00> : vector<256x128xf32>
      %61 = tpu.matmul %57, %60, %cst_16 {dimension_numbers = #tpu.dot_dimension_numbers<[1], [0], [0], [1], [0, 0, 1, 1], [], []>} : vector<256x128xbf16>, vector<128x128xbf16>, vector<256x128xf32> -> vector<256x128xf32>
      %62 = arith.addf %58, %61 : vector<256x128xf32>
      %c0_17 = arith.constant 0 : index
      %c0_18 = arith.constant 0 : index
      %63 = vector.load %arg10[%c0_17, %c0_18] : memref<256x128xf32, #tpu.memory_space<vmem>>, vector<256x128xf32>
      tpu.vector_store %arg10[%c0_17, %c0_18], %62 {strides = array<i32>} : memref<256x128xf32, #tpu.memory_space<vmem>>, vector<256x128xf32>,
    } else {
    }
    %c0_i32_7 = arith.constant 0 : i32
    %41 = arith.cmpi eq, %arg2, %c0_i32_7 : i32
    %42 = arith.andi %1, %41 : i1
    %43 = arith.extui %42 : i1 to i32
    %c0_i32_8 = arith.constant 0 : i32
    %44 = arith.cmpi ne, %43, %c0_i32_8 : i32
    scf.if %44 {
      %c0_9 = arith.constant 0 : index
      %c0_10 = arith.constant 0 : index
      %45 = vector.load %arg10[%c0_9, %c0_10] : memref<256x128xf32, #tpu.memory_space<vmem>>, vector<256x128xf32>
      %c0_11 = arith.constant 0 : index
      %c0_12 = arith.constant 0 : index
      %46 = vector.load %arg9[%c0_11, %c0_12] : memref<256x128xf32, #tpu.memory_space<vmem>>, vector<256x128xf32>
      tpu.vector_store %arg9[%c0_11, %c0_12], %45 {strides = array<i32>} : memref<256x128xf32, #tpu.memory_space<vmem>>, vector<256x128xf32>,
    } else {
    }
    return
  }
  func.func @transform_0(%arg0: i32, %arg1: i32, %arg2: i32, %arg3: memref<5xi32, #tpu.memory_space<smem>>, %arg4: memref<5xi32, #tpu.memory_space<smem>>, %arg5: memref<5xi32, #tpu.memory_space<smem>>, %arg6: memref<1xi32, #tpu.memory_space<smem>>) -> (i32, i32) {
    %0 = arith.index_cast %arg1 : i32 to index
    %1 = memref.load %arg5[%0] : memref<5xi32, #tpu.memory_space<smem>>
    %c0 = arith.constant 0 : index
    %2 = memref.load %arg6[%c0] : memref<1xi32, #tpu.memory_space<smem>>
    %3 = arith.cmpi slt, %arg1, %2 : i32
    %c0_i32 = arith.constant 0 : i32
    %4 = arith.select %3, %arg2, %c0_i32 : i32
    %c0_i32_0 = arith.constant 0 : i32
    return %1, %4 : i32, i32
  }
  func.func @transform_1(%arg0: i32, %arg1: i32, %arg2: i32, %arg3: memref<5xi32, #tpu.memory_space<smem>>, %arg4: memref<5xi32, #tpu.memory_space<smem>>, %arg5: memref<5xi32, #tpu.memory_space<smem>>, %arg6: memref<1xi32, #tpu.memory_space<smem>>) -> (i32, i32, i32) {
    %0 = arith.index_cast %arg1 : i32 to index
    %1 = memref.load %arg4[%0] : memref<5xi32, #tpu.memory_space<smem>>
    %c0 = arith.constant 0 : index
    %2 = memref.load %arg6[%c0] : memref<1xi32, #tpu.memory_space<smem>>
    %3 = arith.cmpi slt, %arg1, %2 : i32
    %c0_i32 = arith.constant 0 : i32
    %4 = arith.select %3, %arg2, %c0_i32 : i32
    %c0_i32_0 = arith.constant 0 : i32
    return %1, %4, %arg0 : i32, i32, i32
  }
  func.func @transform_2(%arg0: i32, %arg1: i32, %arg2: i32, %arg3: memref<5xi32, #tpu.memory_space<smem>>, %arg4: memref<5xi32, #tpu.memory_space<smem>>, %arg5: memref<5xi32, #tpu.memory_space<smem>>, %arg6: memref<1xi32, #tpu.memory_space<smem>>) -> (i32, i32) {
    %0 = arith.index_cast %arg1 : i32 to index
    %1 = memref.load %arg5[%0] : memref<5xi32, #tpu.memory_space<smem>>
    %c0_i32 = arith.constant 0 : i32
    return %1, %arg0 : i32, i32
  }
}

</mosaic_0001>

<llo_original>
// kernel: tpu_custom_call.1
$region0: #{tpu_custom_call.1}
  #allocation0 [shape = 'u32[]', space=smem, size = 0x4, offset = 0x4, fixed_abs, tag = 'smem constant byte address 0x4 - core index']
  #allocation1 [shape = 'u32[72,128]{1,0:T(1,128)}', space=vmem, size = 0x9000, scoped, tag = 'internal scratch']
  #allocation2 [shape = 'f32[256,128]{1,0:T(8,128)}', space=vmem, size = 0x20000, scoped, tag = 'scratch operand']
  #allocation3 [shape = 's32[1]{0}', space=sflag, size = 0x4, scoped, tag = 'scoped memory for tpu_custom_call.1']
  #allocation4 [shape = 'u8[512]{0}', space=smem, size = 0x200, scoped, tag = 'prefetched SMEM operand 0']
  #allocation5 [shape = 'u8[512]{0}', space=smem, size = 0x200, scoped, tag = 'prefetched SMEM operand 1']
  #allocation6 [shape = 'u8[512]{0}', space=smem, size = 0x200, scoped, tag = 'prefetched SMEM operand 2']
  #allocation7 [shape = 's32[1]{0:T(128)S(6)}', space=smem, size = 0x200, scoped, tag = 'prefetched SMEM operand 3']
  %s0 = inlined_call_operand.vmem [shape: s32[5], index: 0, kind: input, shape index: {}]
  %s1 = inlined_call_operand.vmem [shape: s32[5], index: 1, kind: input, shape index: {}]
  %s2 = inlined_call_operand.vmem [shape: s32[5], index: 2, kind: input, shape index: {}]
  %s3 = inlined_call_operand.<no memory space> [shape: s32[1], index: 3, kind: input, shape index: {}]
  %s4 = inlined_call_operand.hbm [shape: bf16[256,128], index: 4, kind: input, shape index: {}]
  %s5 = inlined_call_operand.hbm [shape: bf16[4,128,256], index: 5, kind: input, shape index: {}]
  %s6 = inlined_call_operand.hbm [shape: f32[256,256], index: 6, kind: output, shape index: {}]
  %s7 = sld [smem:[#allocation0]]
  $region65: #{tpu_custom_call.1} parent=0
    _
  %s9 = ssub.s32 1, %s7
  %s10 = scalar_select 0, %s9, %s7
  %s12 = sshll.u32 %s0, 4
  %s13 = int_to_ptr.vmem [resolvable:$true] %s12
  %15 = dma.vmem_to_smem %s13, 16, [#allocation4], [#allocation3]
  %s17 = sshll.u32 %s1, 4
  %s18 = int_to_ptr.vmem [resolvable:$true] %s17
  %20 = dma.vmem_to_smem %s18, 16, [#allocation5], [#allocation3]
  %s22 = sshll.u32 %s2, 4
  %s23 = int_to_ptr.vmem [resolvable:$true] %s22
  %25 = dma.vmem_to_smem %s23, 16, [#allocation6], [#allocation3]
  %26 = sst [smem:[#allocation7]] %s3
  %28 = dma.done [#allocation3], 48
  %29 = sfence
  $region1: #{tpu_custom_call.1} parent=0
    #allocation8 [shape = 'u8[131072]{0}', space=vmem, size = 0x20000, scoped, tag = 'input window, operand 4']
    #allocation9 [shape = 's32[2]{0}', space=sflag, size = 0x8, scoped, tag = 'scoped memory for tpu_custom_call.1']
    #allocation10 [shape = 's32[2]{0}', space=sflag, size = 0x8, scoped, tag = 'scoped memory for tpu_custom_call.1']
    #allocation11 [shape = 'u8[65536]{0}', space=vmem, size = 0x10000, scoped, tag = 'input window, operand 5']
    #allocation12 [shape = 's32[2]{0}', space=sflag, size = 0x8, scoped, tag = 'scoped memory for tpu_custom_call.1']
    #allocation13 [shape = 'u8[262144]{0}', space=vmem, size = 0x40000, scoped, tag = 'output window, operand 0']
    %30 = vsyncpa [#allocation9], 0
    %s31 = scalar_lea.sflag [#allocation9], 1
    %32 = vsyncpa %s31, 0
    %33 = vsyncpa [#allocation12], 0
    %s34 = scalar_lea.sflag [#allocation12], 1
    %35 = vsyncpa %s34, 0
    %36 = vsyncpa [#allocation10], 0
    %s37 = scalar_lea.sflag [#allocation10], 1
    %38 = vsyncpa %s37, 0
    loop: start=0, step=1, limit=12
    $region2: #{tpu_custom_call.1} parent=1 // loop_pre_header
      _
    $region3: #{tpu_custom_call.1} parent=1 // loop_header
      %s40 = sphi 0, %s44
      %p41 = scmp.ge.s32.totalorder %s40, 12
      %s47 = sphi 0, %s66
      %s48 = sphi 0, %s62
      %s49 = sphi 0, %s58
      %s50 = sphi 0, %s47
      %s51 = sphi 0, %s48
      %s52 = sphi 0, %s49
      %s53 = sphi 0, %s50
      %s54 = sphi 0, %s51
      %s55 = sphi 0, %s52
      %s79 = sphi 0, %s81
      %s82 = sphi 0, %s79
      %s83 = sphi 0, %s82
      %s99 = sphi 0, %s83
      %s117 = sphi 0, %s119
      %s120 = sphi 0, %s117
      %s121 = sphi 0, %s120
      %s137 = sphi 0, %s121
      %s147 = sphi 0, %s149
      %s150 = sphi 0, %s147
      %s151 = sphi 0, %s150
      %s167 = sphi 0, %s151
    $region4: #{tpu_custom_call.1} parent=1 // loop_header_branch
      %43 = sbr.rel (%p41) target = $region8
    $region5: #{tpu_custom_call.1} parent=1 // loop_body
      %s45 = ssub.s32 %s40, 1
      %s46 = ssub.s32 %s40, 2
      %s56 = sadd.s32 1, %s49
      %p57 = scmp.ge.s32.totalorder %s56, 1
      %s58 = scalar_select %p57, 0, %s56
      %s59 = sadd.s32 1, %s48
      %s60 = scalar_select %p57, %s59, %s48
      %p61 = scmp.ge.s32.totalorder %s60, 5
      %s62 = scalar_select %p61, 0, %s60
      %s63 = sadd.s32 1, %s47
      %s64 = scalar_select %p61, %s63, %s47
      %p65 = scmp.ge.s32.totalorder %s64, 2
      %s66 = scalar_select %p65, 0, %s64
      %s67 = sld [smem:[#allocation6 + %s48]]
      %s68 = sld [smem:[#allocation7]]
      %p69 = scmp.lt.s32.totalorder %s48, %s68
      %s70 = scalar_select %p69, %s49, 0
      %s71 = sld [smem:[#allocation6 + %s62]]
      %s72 = sld [smem:[#allocation7]]
      %p73 = scmp.lt.s32.totalorder %s62, %s72
      %s74 = scalar_select %p73, %s58, 0
      %s75 = ssub.s32 %s67, %s71
      %s76 = ssub.s32 %s70, %s74
      %s77 = sor.u32 %s75, %s76
      %p78 = scmp.eq.s32.totalorder %s77, 0
      %s80 = sadd.s32 %s79, 1
      %s81 = scalar_select %p78, %s79, %s80
      %p84 = pneg %p78
      %p85 = scmp.eq.s32.totalorder %s40, 9
      %p86 = por %p84, %p85
      %p87 = scmp.ne.s32.totalorder %s79, %s82
      %p88 = scmp.eq.s32.totalorder %s40, 0
      %p89 = por %p87, %p88
      %p90 = scmp.ne.s32.totalorder %s79, %s82
      %p91 = scmp.eq.s32.totalorder %s45, 9
      %p92 = por %p90, %p91
      %p93 = scmp.ne.s32.totalorder %s82, %s83
      %p94 = scmp.eq.s32.totalorder %s45, 0
      %p95 = por %p93, %p94
      %p96 = scmp.ne.s32.totalorder %s82, %s83
      %p97 = scmp.eq.s32.totalorder %s46, 9
      %p98 = por %p96, %p97
      %p100 = scmp.ne.s32.totalorder %s83, %s99
      %p101 = scmp.eq.s32.totalorder %s46, 0
      %p102 = por %p100, %p101
      %s103 = sld [smem:[#allocation5 + %s48]]
      %s104 = sld [smem:[#allocation7]]
      %p105 = scmp.lt.s32.totalorder %s48, %s104
      %s106 = scalar_select %p105, %s49, 0
      %s107 = sld [smem:[#allocation5 + %s62]]
      %s108 = sld [smem:[#allocation7]]
      %p109 = scmp.lt.s32.totalorder %s62, %s108
      %s110 = scalar_select %p109, %s58, 0
      %s111 = ssub.s32 %s103, %s107
      %s112 = ssub.s32 %s106, %s110
      %s113 = sor.u32 %s111, %s112
      %s114 = ssub.s32 %s47, %s66
      %s115 = sor.u32 %s113, %s114
      %p116 = scmp.eq.s32.totalorder %s115, 0
      %s118 = sadd.s32 %s117, 1
      %s119 = scalar_select %p116, %s117, %s118
      %p122 = pneg %p116
      %p123 = scmp.eq.s32.totalorder %s40, 9
      %p124 = por %p122, %p123
      %p125 = scmp.ne.s32.totalorder %s117, %s120
      %p126 = scmp.eq.s32.totalorder %s40, 0
      %p127 = por %p125, %p126
      %p128 = scmp.ne.s32.totalorder %s117, %s120
      %p129 = scmp.eq.s32.totalorder %s45, 9
      %p130 = por %p128, %p129
      %p131 = scmp.ne.s32.totalorder %s120, %s121
      %p132 = scmp.eq.s32.totalorder %s45, 0
      %p133 = por %p131, %p132
      %p134 = scmp.ne.s32.totalorder %s120, %s121
      %p135 = scmp.eq.s32.totalorder %s46, 9
      %p136 = por %p134, %p135
      %p138 = scmp.ne.s32.totalorder %s121, %s137
      %p139 = scmp.eq.s32.totalorder %s46, 0
      %p140 = por %p138, %p139
      %s141 = sld [smem:[#allocation6 + %s48]]
      %s142 = sld [smem:[#allocation6 + %s62]]
      %s143 = ssub.s32 %s141, %s142
      %s144 = ssub.s32 %s47, %s66
      %s145 = sor.u32 %s143, %s144
      %p146 = scmp.eq.s32.totalorder %s145, 0
      %s148 = sadd.s32 %s147, 1
      %s149 = scalar_select %p146, %s147, %s148
      %p152 = pneg %p146
      %p153 = scmp.eq.s32.totalorder %s40, 9
      %p154 = por %p152, %p153
      %p155 = scmp.ne.s32.totalorder %s147, %s150
      %p156 = scmp.eq.s32.totalorder %s40, 0
      %p157 = por %p155, %p156
      %p158 = scmp.ne.s32.totalorder %s147, %s150
      %p159 = scmp.eq.s32.totalorder %s45, 9
      %p160 = por %p158, %p159
      %p161 = scmp.ne.s32.totalorder %s150, %s151
      %p162 = scmp.eq.s32.totalorder %s45, 0
      %p163 = por %p161, %p162
      %p164 = scmp.ne.s32.totalorder %s150, %s151
      %p165 = scmp.eq.s32.totalorder %s46, 9
      %p166 = por %p164, %p165
      %p168 = scmp.ne.s32.totalorder %s151, %s167
      %p169 = scmp.eq.s32.totalorder %s46, 0
      %p170 = por %p168, %p169
      %p171 = scmp.le.s32.totalorder 1, %s40
      %p172 = scmp.lt.s32.totalorder %s40, 11
      %p173 = pnand %p171, %p172
      %p174 = pneg %p173
      // Predicated region
      $region9: #{tpu_custom_call.1} parent=5 // pred_check
        _
      $region10: #{tpu_custom_call.1} parent=5 // pred_check_branch
        %176 = sbr.rel (%p173) target = $region12
      $region11: #{tpu_custom_call.1} parent=5 // pred_region
        %s177 = ssub.s32 %s40, 1
      $region12: #{tpu_custom_call.1} parent=5 // pred_fallthru
        _
      %p178 = scmp.lt.s32.totalorder %s40, 10
      // Predicated region
      $region13: #{tpu_custom_call.1} parent=5 // pred_check
        %p179 = pneg %p178
      $region14: #{tpu_custom_call.1} parent=5 // pred_check_branch
        %181 = sbr.rel (%p179) target = $region16
      $region15: #{tpu_custom_call.1} parent=5 // pred_region
        // Predicated region
        $region17: #{tpu_custom_call.1} parent=15 // pred_check
          %p182 = pneg %p89
        $region18: #{tpu_custom_call.1} parent=15 // pred_check_branch
          %184 = sbr.rel (%p182) target = $region20
        $region19: #{tpu_custom_call.1} parent=15 // pred_region
          %s185 = sand.u32 %s79, 1
          %s186 = scalar_lea.sflag [#allocation9], %s185
          %s187 = sand.u32 %s79, 1
          %s188 = smul.addr %s187, 128
          %s189 = scalar_lea.vmem [#allocation8], %s188
          %s190 = sld [smem:[#allocation6 + %s48]]
          %s191 = sld [smem:[#allocation7]]
          %p192 = scmp.lt.s32.totalorder %s48, %s191
          %s193 = scalar_select %p192, %s49, 0
          %s194 = smul.u32 32, %s190
          %196 = vsyncadd %s186, 0
          %s197 = sadd.s32 %s193, %s194
          %s198 = smul.addr %s197, 4
          %s199 = scalar_lea.hbm %s4, %s198
          %s200 = sshll.u32 %s199, 4
          %s201 = int_to_ptr.hbm [resolvable:$true] %s200
          %s202 = sshll.u32 %s189, 4
          %s203 = int_to_ptr.vmem [resolvable:$true] %s202
          %208 = dma.hbm_to_vmem [thread:$0]  %s201, 2048, %s203, %s186, 64, 64, 4
        $region20: #{tpu_custom_call.1} parent=15 // pred_fallthru
          _
        // Predicated region
        $region21: #{tpu_custom_call.1} parent=15 // pred_check
          %p209 = pneg %p127
        $region22: #{tpu_custom_call.1} parent=15 // pred_check_branch
          %211 = sbr.rel (%p209) target = $region24
        $region23: #{tpu_custom_call.1} parent=15 // pred_region
          %s212 = sand.u32 %s117, 1
          %s213 = scalar_lea.sflag [#allocation12], %s212
          %s214 = sand.u32 %s117, 1
          %s215 = smul.addr %s214, 64
          %s216 = scalar_lea.vmem [#allocation11], %s215
          %s217 = sld [smem:[#allocation5 + %s48]]
          %s218 = sld [smem:[#allocation7]]
          %p219 = scmp.lt.s32.totalorder %s48, %s218
          %s220 = scalar_select %p219, %s49, 0
          %s221 = smul.u32 16, %s220
          %223 = vsyncadd %s213, 0
          %s224 = smul.addr %s221, 2
          %s225 = sadd.s32 %s47, %s224
          %s226 = smul.addr %s217, 32
          %s227 = sadd.s32 %s225, %s226
          %s228 = smul.addr %s227, 4
          %s229 = scalar_lea.hbm %s5, %s228
          %s230 = sshll.u32 %s229, 4
          %s231 = int_to_ptr.hbm [resolvable:$true] %s230
          %s232 = sshll.u32 %s216, 4
          %s233 = int_to_ptr.vmem [resolvable:$true] %s232
          %238 = dma.hbm_to_vmem [thread:$0]  %s231, 1024, %s233, %s213, 128, 64, 4
        $region24: #{tpu_custom_call.1} parent=15 // pred_fallthru
          _
      $region16: #{tpu_custom_call.1} parent=5 // pred_fallthru
        _
      %p239 = scmp.le.s32.totalorder 1, %s40
      %p240 = scmp.lt.s32.totalorder %s40, 11
      %p241 = pnand %p239, %p240
      %p242 = pneg %p241
      // Predicated region
      $region25: #{tpu_custom_call.1} parent=5 // pred_check
        _
      $region26: #{tpu_custom_call.1} parent=5 // pred_check_branch
        %244 = sbr.rel (%p241) target = $region28
      $region27: #{tpu_custom_call.1} parent=5 // pred_region
        %s245 = ssub.s32 %s40, 1
        %s246 = sand.u32 %s82, 1
        %s247 = scalar_lea.sflag [#allocation9], %s246
        %s248 = sand.u32 %s82, 1
        %s249 = smul.addr %s248, 128
        %s250 = scalar_lea.vmem [#allocation8], %s249
        // Predicated region
        $region29: #{tpu_custom_call.1} parent=27 // pred_check
          %p251 = pneg %p95
        $region30: #{tpu_custom_call.1} parent=27 // pred_check_branch
          %253 = sbr.rel (%p251) target = $region32
        $region31: #{tpu_custom_call.1} parent=27 // pred_region
          %255 = dma.done %s247, 2048
        $region32: #{tpu_custom_call.1} parent=27 // pred_fallthru
          _
        %s256 = sand.u32 %s120, 1
        %s257 = scalar_lea.sflag [#allocation12], %s256
        %s258 = sand.u32 %s120, 1
        %s259 = smul.addr %s258, 64
        %s260 = scalar_lea.vmem [#allocation11], %s259
        // Predicated region
        $region33: #{tpu_custom_call.1} parent=27 // pred_check
          %p261 = pneg %p133
        $region34: #{tpu_custom_call.1} parent=27 // pred_check_branch
          %263 = sbr.rel (%p261) target = $region36
        $region35: #{tpu_custom_call.1} parent=27 // pred_region
          %265 = dma.done %s257, 1024
        $region36: #{tpu_custom_call.1} parent=27 // pred_fallthru
          _
        %s266 = sand.u32 %s82, 1
        %s267 = scalar_lea.sflag [#allocation9], %s266
        %s268 = sand.u32 %s82, 1
        %s269 = smul.addr %s268, 128
        %s270 = scalar_lea.vmem [#allocation8], %s269
        %p271 = pneg %p95
        %p272 = pneg %p92
        %s273 = sand.u32 %s120, 1
        %s274 = scalar_lea.sflag [#allocation12], %s273
        %s275 = sand.u32 %s120, 1
        %s276 = smul.addr %s275, 64
        %s277 = scalar_lea.vmem [#allocation11], %s276
        %p278 = pneg %p133
        %p279 = pneg %p130
        %p280 = pneg %p163
        %p281 = pneg %p160
        %s282 = sand.u32 %s150, 1
        %s283 = scalar_lea.sflag [#allocation10], %s282
        %s284 = sand.u32 %s150, 1
        %s285 = smul.addr %s284, 256
        %s286 = scalar_lea.vmem [#allocation13], %s285
        %s287 = sld [smem:[#allocation6 + %s51]]
        %s288 = sld [smem:[#allocation7]]
        %p289 = scmp.lt.s32.totalorder %s51, %s288
        %s290 = scalar_select %p289, %s52, 0
        %s291 = smul.u32 32, %s287
        %s292 = sld [smem:[#allocation5 + %s51]]
        %s293 = sld [smem:[#allocation7]]
        %p294 = scmp.lt.s32.totalorder %s51, %s293
        %s295 = scalar_select %p294, %s52, 0
        %s296 = smul.u32 16, %s295
        %s297 = sld [smem:[#allocation6 + %s51]]
        %s298 = smul.u32 32, %s297
        %s300 = sld [smem:[#allocation7]]
        %p301 = scmp.lt.s32.totalorder %s51, %s300
        %s302 = sld [smem:[#allocation5 + %s51]]
        %s303 = sld [smem:[#allocation6 + %s51]]
        %s304 = ssub.s32 %s51, 1
        %p305 = scmp.gt.s32.totalorder %s304, 0
        %s306 = scalar_select %p305, %s304, 0
        %s307 = sld [smem:[#allocation6 + %s306]]
        %p308 = scmp.eq.s32.totalorder %s51, 0
        %p309 = scmp.ne.s32.totalorder %s303, %s307
        %p310 = por %p308, %p309
        %p311 = pnand %p301, %p310
        %p312 = pneg %p311
        %p313 = scmp.eq.s32.totalorder %s52, 0
        %p314 = pnand %p312, %p313
        %p315 = pneg %p314
        // Predicated region
        $region37: #{tpu_custom_call.1} parent=27 // pred_check
          _
        $region38: #{tpu_custom_call.1} parent=27 // pred_check_branch
          %317 = sbr.rel (%p314) target = $region40
        $region39: #{tpu_custom_call.1} parent=27 // pred_region
          %318 = vst [vmem:[#allocation2] sm:$0xff] 0.0
          %319 = vst [vmem:[#allocation2 + $0x8] sm:$0xff] 0.0
          %320 = vst [vmem:[#allocation2 + $0x10] sm:$0xff] 0.0
          %321 = vst [vmem:[#allocation2 + $0x18] sm:$0xff] 0.0
          %322 = vst [vmem:[#allocation2 + $0x20] sm:$0xff] 0.0
          %323 = vst [vmem:[#allocation2 + $0x28] sm:$0xff] 0.0
          %324 = vst [vmem:[#allocation2 + $0x30] sm:$0xff] 0.0
          %325 = vst [vmem:[#allocation2 + $0x38] sm:$0xff] 0.0
          %326 = vst [vmem:[#allocation2 + $0x40] sm:$0xff] 0.0
          %327 = vst [vmem:[#allocation2 + $0x48] sm:$0xff] 0.0
          %328 = vst [vmem:[#allocation2 + $0x50] sm:$0xff] 0.0
          %329 = vst [vmem:[#allocation2 + $0x58] sm:$0xff] 0.0
          %330 = vst [vmem:[#allocation2 + $0x60] sm:$0xff] 0.0
          %331 = vst [vmem:[#allocation2 + $0x68] sm:$0xff] 0.0
          %332 = vst [vmem:[#allocation2 + $0x70] sm:$0xff] 0.0
          %333 = vst [vmem:[#allocation2 + $0x78] sm:$0xff] 0.0
          %334 = vst [vmem:[#allocation2 + $0x80] sm:$0xff] 0.0
          %335 = vst [vmem:[#allocation2 + $0x88] sm:$0xff] 0.0
          %336 = vst [vmem:[#allocation2 + $0x90] sm:$0xff] 0.0
          %337 = vst [vmem:[#allocation2 + $0x98] sm:$0xff] 0.0
          %338 = vst [vmem:[#allocation2 + $0xa0] sm:$0xff] 0.0
          %339 = vst [vmem:[#allocation2 + $0xa8] sm:$0xff] 0.0
          %340 = vst [vmem:[#allocation2 + $0xb0] sm:$0xff] 0.0
          %341 = vst [vmem:[#allocation2 + $0xb8] sm:$0xff] 0.0
          %342 = vst [vmem:[#allocation2 + $0xc0] sm:$0xff] 0.0
          %343 = vst [vmem:[#allocation2 + $0xc8] sm:$0xff] 0.0
          %344 = vst [vmem:[#allocation2 + $0xd0] sm:$0xff] 0.0
          %345 = vst [vmem:[#allocation2 + $0xd8] sm:$0xff] 0.0
          %346 = vst [vmem:[#allocation2 + $0xe0] sm:$0xff] 0.0
          %347 = vst [vmem:[#allocation2 + $0xe8] sm:$0xff] 0.0
          %348 = vst [vmem:[#allocation2 + $0xf0] sm:$0xff] 0.0
          %349 = vst [vmem:[#allocation2 + $0xf8] sm:$0xff] 0.0
        $region40: #{tpu_custom_call.1} parent=27 // pred_fallthru
          _
        %s350 = sld [smem:[#allocation4 + %s302]]
        %s351 = sadd.s32 %s302, 1
        %s352 = sld [smem:[#allocation4 + %s351]]
        %s353 = smul.u32 %s303, 256
        %s354 = sadd.s32 %s353, 256
        %p355 = scmp.lt.s32.totalorder %s350, %s352
        %p356 = scmp.lt.s32.totalorder %s353, %s352
        %p357 = pnand %p355, %p356
        %p358 = pneg %p357
        %p359 = scmp.gt.s32.totalorder %s354, %s350
        %p360 = pnand %p358, %p359
        %p361 = pneg %p360
        %p362 = pnand %p301, %p361
        %p363 = pneg %p362
        %p364 = scmp.ge.s32.totalorder %s353, %s350
        %p365 = scmp.le.s32.totalorder %s354, %s352
        %p366 = pnand %p364, %p365
        %p367 = pneg %p366
        %p368 = pnand %p363, %p367
        %p369 = pneg %p368
        // Predicated region
        $region41: #{tpu_custom_call.1} parent=27 // pred_check
          _
        $region42: #{tpu_custom_call.1} parent=27 // pred_check_branch
          %371 = sbr.rel (%p368) target = $region44
        $region43: #{tpu_custom_call.1} parent=27 // pred_region
          %v372 = vld [vmem:[#allocation2] sm:$0xff]
          %v373 = vld [vmem:[#allocation2 + $0x8] sm:$0xff]
          %v374 = vld [vmem:[#allocation2 + $0x10] sm:$0xff]
          %v375 = vld [vmem:[#allocation2 + $0x18] sm:$0xff]
          %v376 = vld [vmem:[#allocation2 + $0x20] sm:$0xff]
          %v377 = vld [vmem:[#allocation2 + $0x28] sm:$0xff]
          %v378 = vld [vmem:[#allocation2 + $0x30] sm:$0xff]
          %v379 = vld [vmem:[#allocation2 + $0x38] sm:$0xff]
          %v380 = vld [vmem:[#allocation2 + $0x40] sm:$0xff]
          %v381 = vld [vmem:[#allocation2 + $0x48] sm:$0xff]
          %v382 = vld [vmem:[#allocation2 + $0x50] sm:$0xff]
          %v383 = vld [vmem:[#allocation2 + $0x58] sm:$0xff]
          %v384 = vld [vmem:[#allocation2 + $0x60] sm:$0xff]
          %v385 = vld [vmem:[#allocation2 + $0x68] sm:$0xff]
          %v386 = vld [vmem:[#allocation2 + $0x70] sm:$0xff]
          %v387 = vld [vmem:[#allocation2 + $0x78] sm:$0xff]
          %v388 = vld [vmem:[#allocation2 + $0x80] sm:$0xff]
          %v389 = vld [vmem:[#allocation2 + $0x88] sm:$0xff]
          %v390 = vld [vmem:[#allocation2 + $0x90] sm:$0xff]
          %v391 = vld [vmem:[#allocation2 + $0x98] sm:$0xff]
          %v392 = vld [vmem:[#allocation2 + $0xa0] sm:$0xff]
          %v393 = vld [vmem:[#allocation2 + $0xa8] sm:$0xff]
          %v394 = vld [vmem:[#allocation2 + $0xb0] sm:$0xff]
          %v395 = vld [vmem:[#allocation2 + $0xb8] sm:$0xff]
          %v396 = vld [vmem:[#allocation2 + $0xc0] sm:$0xff]
          %v397 = vld [vmem:[#allocation2 + $0xc8] sm:$0xff]
          %v398 = vld [vmem:[#allocation2 + $0xd0] sm:$0xff]
          %v399 = vld [vmem:[#allocation2 + $0xd8] sm:$0xff]
          %v400 = vld [vmem:[#allocation2 + $0xe0] sm:$0xff]
          %v401 = vld [vmem:[#allocation2 + $0xe8] sm:$0xff]
          %v402 = vld [vmem:[#allocation2 + $0xf0] sm:$0xff]
          %v403 = vld [vmem:[#allocation2 + $0xf8] sm:$0xff]
          %v404 = vld [vmem:[%s250] sm:$0xf]
          %v405 = vld [vmem:[%s250 + $0x4] sm:$0xf]
          %v406 = vld [vmem:[%s250 + $0x8] sm:$0xf]
          %v407 = vld [vmem:[%s250 + $0xc] sm:$0xf]
          %v408 = vld [vmem:[%s250 + $0x10] sm:$0xf]
          %v409 = vld [vmem:[%s250 + $0x14] sm:$0xf]
          %v410 = vld [vmem:[%s250 + $0x18] sm:$0xf]
          %v411 = vld [vmem:[%s250 + $0x1c] sm:$0xf]
          %v412 = vld [vmem:[%s250 + $0x20] sm:$0xf]
          %v413 = vld [vmem:[%s250 + $0x24] sm:$0xf]
          %v414 = vld [vmem:[%s250 + $0x28] sm:$0xf]
          %v415 = vld [vmem:[%s250 + $0x2c] sm:$0xf]
          %v416 = vld [vmem:[%s250 + $0x30] sm:$0xf]
          %v417 = vld [vmem:[%s250 + $0x34] sm:$0xf]
          %v418 = vld [vmem:[%s250 + $0x38] sm:$0xf]
          %v419 = vld [vmem:[%s250 + $0x3c] sm:$0xf]
          %v420 = vld [vmem:[%s250 + $0x40] sm:$0xf]
          %v421 = vld [vmem:[%s250 + $0x44] sm:$0xf]
          %v422 = vld [vmem:[%s250 + $0x48] sm:$0xf]
          %v423 = vld [vmem:[%s250 + $0x4c] sm:$0xf]
          %v424 = vld [vmem:[%s250 + $0x50] sm:$0xf]
          %v425 = vld [vmem:[%s250 + $0x54] sm:$0xf]
          %v426 = vld [vmem:[%s250 + $0x58] sm:$0xf]
          %v427 = vld [vmem:[%s250 + $0x5c] sm:$0xf]
          %v428 = vld [vmem:[%s250 + $0x60] sm:$0xf]
          %v429 = vld [vmem:[%s250 + $0x64] sm:$0xf]
          %v430 = vld [vmem:[%s250 + $0x68] sm:$0xf]
          %v431 = vld [vmem:[%s250 + $0x6c] sm:$0xf]
          %v432 = vld [vmem:[%s250 + $0x70] sm:$0xf]
          %v433 = vld [vmem:[%s250 + $0x74] sm:$0xf]
          %v434 = vld [vmem:[%s250 + $0x78] sm:$0xf]
          %v435 = vld [vmem:[%s250 + $0x7c] sm:$0xf]
          %v436 = vld [vmem:[%s260] sm:$0xf]
          %v437 = vld [vmem:[%s260 + $0x4] sm:$0xf]
          %v438 = vld [vmem:[%s260 + $0x8] sm:$0xf]
          %v439 = vld [vmem:[%s260 + $0xc] sm:$0xf]
          %v440 = vld [vmem:[%s260 + $0x10] sm:$0xf]
          %v441 = vld [vmem:[%s260 + $0x14] sm:$0xf]
          %v442 = vld [vmem:[%s260 + $0x18] sm:$0xf]
          %v443 = vld [vmem:[%s260 + $0x1c] sm:$0xf]
          %v444 = vld [vmem:[%s260 + $0x20] sm:$0xf]
          %v445 = vld [vmem:[%s260 + $0x24] sm:$0xf]
          %v446 = vld [vmem:[%s260 + $0x28] sm:$0xf]
          %v447 = vld [vmem:[%s260 + $0x2c] sm:$0xf]
          %v448 = vld [vmem:[%s260 + $0x30] sm:$0xf]
          %v449 = vld [vmem:[%s260 + $0x34] sm:$0xf]
          %v450 = vld [vmem:[%s260 + $0x38] sm:$0xf]
          %v451 = vld [vmem:[%s260 + $0x3c] sm:$0xf]
          %v484 = vunpack.c.l.b16 %v404
          %v485 = vunpack.c.l.b16 %v405
          %v486 = vunpack.c.l.b16 %v406
          %v487 = vunpack.c.l.b16 %v407
          %v488 = vunpack.c.l.b16 %v408
          %v489 = vunpack.c.l.b16 %v409
          %v490 = vunpack.c.l.b16 %v410
          %v491 = vunpack.c.l.b16 %v411
          %v492 = vunpack.c.l.b16 %v412
          %v493 = vunpack.c.l.b16 %v413
          %v494 = vunpack.c.l.b16 %v414
          %v495 = vunpack.c.l.b16 %v415
          %v496 = vunpack.c.l.b16 %v416
          %v497 = vunpack.c.l.b16 %v417
          %v498 = vunpack.c.l.b16 %v418
          %v499 = vunpack.c.l.b16 %v419
          %v500 = vunpack.c.l.b16 %v420
          %v501 = vunpack.c.l.b16 %v421
          %v502 = vunpack.c.l.b16 %v422
          %v503 = vunpack.c.l.b16 %v423
          %v504 = vunpack.c.l.b16 %v424
          %v505 = vunpack.c.l.b16 %v425
          %v506 = vunpack.c.l.b16 %v426
          %v507 = vunpack.c.l.b16 %v427
          %v508 = vunpack.c.l.b16 %v428
          %v509 = vunpack.c.l.b16 %v429
          %v510 = vunpack.c.l.b16 %v430
          %v511 = vunpack.c.l.b16 %v431
          %v512 = vunpack.c.l.b16 %v432
          %v513 = vunpack.c.l.b16 %v433
          %v514 = vunpack.c.l.b16 %v434
          %v515 = vunpack.c.l.b16 %v435
          %v516 = vpack.c.b16 %v485, %v484
          %v517 = vpack.c.b16 %v487, %v486
          %v518 = vpack.c.b16 %v489, %v488
          %v519 = vpack.c.b16 %v491, %v490
          %v520 = vpack.c.b16 %v493, %v492
          %v521 = vpack.c.b16 %v495, %v494
          %v522 = vpack.c.b16 %v497, %v496
          %v523 = vpack.c.b16 %v499, %v498
          %v524 = vpack.c.b16 %v501, %v500
          %v525 = vpack.c.b16 %v503, %v502
          %v526 = vpack.c.b16 %v505, %v504
          %v527 = vpack.c.b16 %v507, %v506
          %v528 = vpack.c.b16 %v509, %v508
          %v529 = vpack.c.b16 %v511, %v510
          %v530 = vpack.c.b16 %v513, %v512
          %v531 = vpack.c.b16 %v515, %v514
          %v564 = vunpack.c.l.b16 %v436
          %v565 = vunpack.c.l.b16 %v437
          %v566 = vunpack.c.l.b16 %v438
          %v567 = vunpack.c.l.b16 %v439
          %v568 = vunpack.c.l.b16 %v440
          %v569 = vunpack.c.l.b16 %v441
          %v570 = vunpack.c.l.b16 %v442
          %v571 = vunpack.c.l.b16 %v443
          %v572 = vunpack.c.l.b16 %v444
          %v573 = vunpack.c.l.b16 %v445
          %v574 = vunpack.c.l.b16 %v446
          %v575 = vunpack.c.l.b16 %v447
          %v576 = vunpack.c.l.b16 %v448
          %v577 = vunpack.c.l.b16 %v449
          %v578 = vunpack.c.l.b16 %v450
          %v579 = vunpack.c.l.b16 %v451
          %v580 = vpack.c.b16 %v565, %v564
          %v581 = vpack.c.b16 %v567, %v566
          %v582 = vpack.c.b16 %v569, %v568
          %v583 = vpack.c.b16 %v571, %v570
          %v584 = vpack.c.b16 %v573, %v572
          %v585 = vpack.c.b16 %v575, %v574
          %v586 = vpack.c.b16 %v577, %v576
          %v587 = vpack.c.b16 %v579, %v578
          %596 = vmatpush.bf16.msra.mxu0 %v587
          %597 = vmatpush.bf16.msra.mxu0 %v586
          %598 = vmatpush.bf16.msra.mxu0 %v585
          %599 = vmatpush.bf16.msra.mxu0 %v584
          %600 = vmatpush.bf16.msra.mxu0 %v583
          %601 = vmatpush.bf16.msra.mxu0 %v582
          %602 = vmatpush.bf16.msra.mxu0 %v581
          %603 = vmatpush.bf16.msra.mxu0 %v580
          %604 = vmatmul.bf16.gmra.mxu0 %v516
          %v605 = vpop.f32.mrf.mxu0
          %v606 = vadd.f32 0.0, %v605
          %v607 = vpop.f32.mrf.mxu0
          %v608 = vadd.f32 0.0, %v607
          %609 = vmatmul.bf16.gmra.mxu0 %v517
          %v610 = vpop.f32.mrf.mxu0
          %v611 = vadd.f32 0.0, %v610
          %v612 = vpop.f32.mrf.mxu0
          %v613 = vadd.f32 0.0, %v612
          %614 = vmatmul.bf16.gmra.mxu0 %v518
          %v615 = vpop.f32.mrf.mxu0
          %v616 = vadd.f32 0.0, %v615
          %v617 = vpop.f32.mrf.mxu0
          %v618 = vadd.f32 0.0, %v617
          %619 = vmatmul.bf16.gmra.mxu0 %v519
          %v620 = vpop.f32.mrf.mxu0
          %v621 = vadd.f32 0.0, %v620
          %v622 = vpop.f32.mrf.mxu0
          %v623 = vadd.f32 0.0, %v622
          %624 = vmatmul.bf16.gmra.mxu0 %v520
          %v625 = vpop.f32.mrf.mxu0
          %v626 = vadd.f32 0.0, %v625
          %v627 = vpop.f32.mrf.mxu0
          %v628 = vadd.f32 0.0, %v627
          %629 = vmatmul.bf16.gmra.mxu0 %v521
          %v630 = vpop.f32.mrf.mxu0
          %v631 = vadd.f32 0.0, %v630
          %v632 = vpop.f32.mrf.mxu0
          %v633 = vadd.f32 0.0, %v632
          %634 = vmatmul.bf16.gmra.mxu0 %v522
          %v635 = vpop.f32.mrf.mxu0
          %v636 = vadd.f32 0.0, %v635
          %v637 = vpop.f32.mrf.mxu0
          %v638 = vadd.f32 0.0, %v637
          %639 = vmatmul.bf16.gmra.mxu0 %v523
          %v640 = vpop.f32.mrf.mxu0
          %v641 = vadd.f32 0.0, %v640
          %v642 = vpop.f32.mrf.mxu0
          %v643 = vadd.f32 0.0, %v642
          %644 = vmatmul.bf16.gmra.mxu0 %v524
          %v645 = vpop.f32.mrf.mxu0
          %v646 = vadd.f32 0.0, %v645
          %v647 = vpop.f32.mrf.mxu0
          %v648 = vadd.f32 0.0, %v647
          %649 = vmatmul.bf16.gmra.mxu0 %v525
          %v650 = vpop.f32.mrf.mxu0
          %v651 = vadd.f32 0.0, %v650
          %v652 = vpop.f32.mrf.mxu0
          %v653 = vadd.f32 0.0, %v652
          %654 = vmatmul.bf16.gmra.mxu0 %v526
          %v655 = vpop.f32.mrf.mxu0
          %v656 = vadd.f32 0.0, %v655
          %v657 = vpop.f32.mrf.mxu0
          %v658 = vadd.f32 0.0, %v657
          %659 = vmatmul.bf16.gmra.mxu0 %v527
          %v660 = vpop.f32.mrf.mxu0
          %v661 = vadd.f32 0.0, %v660
          %v662 = vpop.f32.mrf.mxu0
          %v663 = vadd.f32 0.0, %v662
          %664 = vmatmul.bf16.gmra.mxu0 %v528
          %v665 = vpop.f32.mrf.mxu0
          %v666 = vadd.f32 0.0, %v665
          %v667 = vpop.f32.mrf.mxu0
          %v668 = vadd.f32 0.0, %v667
          %669 = vmatmul.bf16.gmra.mxu0 %v529
          %v670 = vpop.f32.mrf.mxu0
          %v671 = vadd.f32 0.0, %v670
          %v672 = vpop.f32.mrf.mxu0
          %v673 = vadd.f32 0.0, %v672
          %674 = vmatmul.bf16.gmra.mxu0 %v530
          %v675 = vpop.f32.mrf.mxu0
          %v676 = vadd.f32 0.0, %v675
          %v677 = vpop.f32.mrf.mxu0
          %v678 = vadd.f32 0.0, %v677
          %679 = vmatmul.bf16.gmra.mxu0 %v531
          %v680 = vpop.f32.mrf.mxu0
          %v681 = vadd.f32 0.0, %v680
          %v682 = vpop.f32.mrf.mxu0
          %v683 = vadd.f32 0.0, %v682
          %684 = vdwg.mxu0
          %v685 = vadd.f32 %v372, %v606
          %v686 = vadd.f32 %v373, %v608
          %v687 = vadd.f32 %v374, %v611
          %v688 = vadd.f32 %v375, %v613
          %v689 = vadd.f32 %v376, %v616
          %v690 = vadd.f32 %v377, %v618
          %v691 = vadd.f32 %v378, %v621
          %v692 = vadd.f32 %v379, %v623
          %v693 = vadd.f32 %v380, %v626
          %v694 = vadd.f32 %v381, %v628
          %v695 = vadd.f32 %v382, %v631
          %v696 = vadd.f32 %v383, %v633
          %v697 = vadd.f32 %v384, %v636
          %v698 = vadd.f32 %v385, %v638
          %v699 = vadd.f32 %v386, %v641
          %v700 = vadd.f32 %v387, %v643
          %v701 = vadd.f32 %v388, %v646
          %v702 = vadd.f32 %v389, %v648
          %v703 = vadd.f32 %v390, %v651
          %v704 = vadd.f32 %v391, %v653
          %v705 = vadd.f32 %v392, %v656
          %v706 = vadd.f32 %v393, %v658
          %v707 = vadd.f32 %v394, %v661
          %v708 = vadd.f32 %v395, %v663
          %v709 = vadd.f32 %v396, %v666
          %v710 = vadd.f32 %v397, %v668
          %v711 = vadd.f32 %v398, %v671
          %v712 = vadd.f32 %v399, %v673
          %v713 = vadd.f32 %v400, %v676
          %v714 = vadd.f32 %v401, %v678
          %v715 = vadd.f32 %v402, %v681
          %v716 = vadd.f32 %v403, %v683
          %717 = vst [vmem:[#allocation2] sm:$0xff] %v685
          %718 = vst [vmem:[#allocation2 + $0x8] sm:$0xff] %v686
          %719 = vst [vmem:[#allocation2 + $0x10] sm:$0xff] %v687
          %720 = vst [vmem:[#allocation2 + $0x18] sm:$0xff] %v688
          %721 = vst [vmem:[#allocation2 + $0x20] sm:$0xff] %v689
          %722 = vst [vmem:[#allocation2 + $0x28] sm:$0xff] %v690
          %723 = vst [vmem:[#allocation2 + $0x30] sm:$0xff] %v691
          %724 = vst [vmem:[#allocation2 + $0x38] sm:$0xff] %v692
          %725 = vst [vmem:[#allocation2 + $0x40] sm:$0xff] %v693
          %726 = vst [vmem:[#allocation2 + $0x48] sm:$0xff] %v694
          %727 = vst [vmem:[#allocation2 + $0x50] sm:$0xff] %v695
          %728 = vst [vmem:[#allocation2 + $0x58] sm:$0xff] %v696
          %729 = vst [vmem:[#allocation2 + $0x60] sm:$0xff] %v697
          %730 = vst [vmem:[#allocation2 + $0x68] sm:$0xff] %v698
          %731 = vst [vmem:[#allocation2 + $0x70] sm:$0xff] %v699
          %732 = vst [vmem:[#allocation2 + $0x78] sm:$0xff] %v700
          %733 = vst [vmem:[#allocation2 + $0x80] sm:$0xff] %v701
          %734 = vst [vmem:[#allocation2 + $0x88] sm:$0xff] %v702
          %735 = vst [vmem:[#allocation2 + $0x90] sm:$0xff] %v703
          %736 = vst [vmem:[#allocation2 + $0x98] sm:$0xff] %v704
          %737 = vst [vmem:[#allocation2 + $0xa0] sm:$0xff] %v705
          %738 = vst [vmem:[#allocation2 + $0xa8] sm:$0xff] %v706
          %739 = vst [vmem:[#allocation2 + $0xb0] sm:$0xff] %v707
          %740 = vst [vmem:[#allocation2 + $0xb8] sm:$0xff] %v708
          %741 = vst [vmem:[#allocation2 + $0xc0] sm:$0xff] %v709
          %742 = vst [vmem:[#allocation2 + $0xc8] sm:$0xff] %v710
          %743 = vst [vmem:[#allocation2 + $0xd0] sm:$0xff] %v711
          %744 = vst [vmem:[#allocation2 + $0xd8] sm:$0xff] %v712
          %745 = vst [vmem:[#allocation2 + $0xe0] sm:$0xff] %v713
          %746 = vst [vmem:[#allocation2 + $0xe8] sm:$0xff] %v714
          %747 = vst [vmem:[#allocation2 + $0xf0] sm:$0xff] %v715
          %748 = vst [vmem:[#allocation2 + $0xf8] sm:$0xff] %v716
        $region44: #{tpu_custom_call.1} parent=27 // pred_fallthru
          _
        %p749 = pneg %p367
        %p750 = pnand %p363, %p749
        %p751 = pneg %p750
        // Predicated region
        $region45: #{tpu_custom_call.1} parent=27 // pred_check
          _
        $region46: #{tpu_custom_call.1} parent=27 // pred_check_branch
          %753 = sbr.rel (%p750) target = $region48
        $region47: #{tpu_custom_call.1} parent=27 // pred_region
          %v754 = vlaneseq
          %v755 = vshrl.u32 %v754, 7
          %v756 = vadd.s32 %v755, 8
          %v757 = vadd.s32 %v755, 16
          %v758 = vadd.s32 %v755, 24
          %v759 = vadd.s32 %v755, 32
          %v760 = vadd.s32 %v755, 40
          %v761 = vadd.s32 %v755, 48
          %v762 = vadd.s32 %v755, 56
          %v763 = vadd.s32 %v755, 64
          %v764 = vadd.s32 %v755, 72
          %v765 = vadd.s32 %v755, 80
          %v766 = vadd.s32 %v755, 88
          %v767 = vadd.s32 %v755, 96
          %v768 = vadd.s32 %v755, 104
          %v769 = vadd.s32 %v755, 112
          %v770 = vadd.s32 %v755, 120
          %v771 = vadd.s32 %v755, 128
          %v772 = vadd.s32 %v755, 136
          %v773 = vadd.s32 %v755, 144
          %v774 = vadd.s32 %v755, 152
          %v775 = vadd.s32 %v755, 160
          %v776 = vadd.s32 %v755, 168
          %v777 = vadd.s32 %v755, 176
          %v778 = vadd.s32 %v755, 184
          %v779 = vadd.s32 %v755, 192
          %v780 = vadd.s32 %v755, 200
          %v781 = vadd.s32 %v755, 208
          %v782 = vadd.s32 %v755, 216
          %v783 = vadd.s32 %v755, 224
          %v784 = vadd.s32 %v755, 232
          %v785 = vadd.s32 %v755, 240
          %v786 = vadd.s32 %v755, 248
          %v787 = vstv %s353
          %v788 = vadd.s32 %v787, %v755
          %v789 = vadd.s32 %v787, %v756
          %v790 = vadd.s32 %v787, %v757
          %v791 = vadd.s32 %v787, %v758
          %v792 = vadd.s32 %v787, %v759
          %v793 = vadd.s32 %v787, %v760
          %v794 = vadd.s32 %v787, %v761
          %v795 = vadd.s32 %v787, %v762
          %v796 = vadd.s32 %v787, %v763
          %v797 = vadd.s32 %v787, %v764
          %v798 = vadd.s32 %v787, %v765
          %v799 = vadd.s32 %v787, %v766
          %v800 = vadd.s32 %v787, %v767
          %v801 = vadd.s32 %v787, %v768
          %v802 = vadd.s32 %v787, %v769
          %v803 = vadd.s32 %v787, %v770
          %v804 = vadd.s32 %v787, %v771
          %v805 = vadd.s32 %v787, %v772
          %v806 = vadd.s32 %v787, %v773
          %v807 = vadd.s32 %v787, %v774
          %v808 = vadd.s32 %v787, %v775
          %v809 = vadd.s32 %v787, %v776
          %v810 = vadd.s32 %v787, %v777
          %v811 = vadd.s32 %v787, %v778
          %v812 = vadd.s32 %v787, %v779
          %v813 = vadd.s32 %v787, %v780
          %v814 = vadd.s32 %v787, %v781
          %v815 = vadd.s32 %v787, %v782
          %v816 = vadd.s32 %v787, %v783
          %v817 = vadd.s32 %v787, %v784
          %v818 = vadd.s32 %v787, %v785
          %v819 = vadd.s32 %v787, %v786
          %v820 = vstv %s350
          %vm821 = vcmp.ge.s32.totalorder %v788, %v820
          %vm822 = vcmp.ge.s32.totalorder %v789, %v820
          %vm823 = vcmp.ge.s32.totalorder %v790, %v820
          %vm824 = vcmp.ge.s32.totalorder %v791, %v820
          %vm825 = vcmp.ge.s32.totalorder %v792, %v820
          %vm826 = vcmp.ge.s32.totalorder %v793, %v820
          %vm827 = vcmp.ge.s32.totalorder %v794, %v820
          %vm828 = vcmp.ge.s32.totalorder %v795, %v820
          %vm829 = vcmp.ge.s32.totalorder %v796, %v820
          %vm830 = vcmp.ge.s32.totalorder %v797, %v820
          %vm831 = vcmp.ge.s32.totalorder %v798, %v820
          %vm832 = vcmp.ge.s32.totalorder %v799, %v820
          %vm833 = vcmp.ge.s32.totalorder %v800, %v820
          %vm834 = vcmp.ge.s32.totalorder %v801, %v820
          %vm835 = vcmp.ge.s32.totalorder %v802, %v820
          %vm836 = vcmp.ge.s32.totalorder %v803, %v820
          %vm837 = vcmp.ge.s32.totalorder %v804, %v820
          %vm838 = vcmp.ge.s32.totalorder %v805, %v820
          %vm839 = vcmp.ge.s32.totalorder %v806, %v820
          %vm840 = vcmp.ge.s32.totalorder %v807, %v820
          %vm841 = vcmp.ge.s32.totalorder %v808, %v820
          %vm842 = vcmp.ge.s32.totalorder %v809, %v820
          %vm843 = vcmp.ge.s32.totalorder %v810, %v820
          %vm844 = vcmp.ge.s32.totalorder %v811, %v820
          %vm845 = vcmp.ge.s32.totalorder %v812, %v820
          %vm846 = vcmp.ge.s32.totalorder %v813, %v820
          %vm847 = vcmp.ge.s32.totalorder %v814, %v820
          %vm848 = vcmp.ge.s32.totalorder %v815, %v820
          %vm849 = vcmp.ge.s32.totalorder %v816, %v820
          %vm850 = vcmp.ge.s32.totalorder %v817, %v820
          %vm851 = vcmp.ge.s32.totalorder %v818, %v820
          %vm852 = vcmp.ge.s32.totalorder %v819, %v820
          %v853 = vstv %s352
          %vm854 = vcmp.lt.s32.totalorder %v788, %v853
          %vm855 = vcmp.lt.s32.totalorder %v789, %v853
          %vm856 = vcmp.lt.s32.totalorder %v790, %v853
          %vm857 = vcmp.lt.s32.totalorder %v791, %v853
          %vm858 = vcmp.lt.s32.totalorder %v792, %v853
          %vm859 = vcmp.lt.s32.totalorder %v793, %v853
          %vm860 = vcmp.lt.s32.totalorder %v794, %v853
          %vm861 = vcmp.lt.s32.totalorder %v795, %v853
          %vm862 = vcmp.lt.s32.totalorder %v796, %v853
          %vm863 = vcmp.lt.s32.totalorder %v797, %v853
          %vm864 = vcmp.lt.s32.totalorder %v798, %v853
          %vm865 = vcmp.lt.s32.totalorder %v799, %v853
          %vm866 = vcmp.lt.s32.totalorder %v800, %v853
          %vm867 = vcmp.lt.s32.totalorder %v801, %v853
          %vm868 = vcmp.lt.s32.totalorder %v802, %v853
          %vm869 = vcmp.lt.s32.totalorder %v803, %v853
          %vm870 = vcmp.lt.s32.totalorder %v804, %v853
          %vm871 = vcmp.lt.s32.totalorder %v805, %v853
          %vm872 = vcmp.lt.s32.totalorder %v806, %v853
          %vm873 = vcmp.lt.s32.totalorder %v807, %v853
          %vm874 = vcmp.lt.s32.totalorder %v808, %v853
          %vm875 = vcmp.lt.s32.totalorder %v809, %v853
          %vm876 = vcmp.lt.s32.totalorder %v810, %v853
          %vm877 = vcmp.lt.s32.totalorder %v811, %v853
          %vm878 = vcmp.lt.s32.totalorder %v812, %v853
          %vm879 = vcmp.lt.s32.totalorder %v813, %v853
          %vm880 = vcmp.lt.s32.totalorder %v814, %v853
          %vm881 = vcmp.lt.s32.totalorder %v815, %v853
          %vm882 = vcmp.lt.s32.totalorder %v816, %v853
          %vm883 = vcmp.lt.s32.totalorder %v817, %v853
          %vm884 = vcmp.lt.s32.totalorder %v818, %v853
          %vm885 = vcmp.lt.s32.totalorder %v819, %v853
          %vm886 = vmand %vm821, %vm854
          %vm887 = vmand %vm822, %vm855
          %vm888 = vmand %vm823, %vm856
          %vm889 = vmand %vm824, %vm857
          %vm890 = vmand %vm825, %vm858
          %vm891 = vmand %vm826, %vm859
          %vm892 = vmand %vm827, %vm860
          %vm893 = vmand %vm828, %vm861
          %vm894 = vmand %vm829, %vm862
          %vm895 = vmand %vm830, %vm863
          %vm896 = vmand %vm831, %vm864
          %vm897 = vmand %vm832, %vm865
          %vm898 = vmand %vm833, %vm866
          %vm899 = vmand %vm834, %vm867
          %vm900 = vmand %vm835, %vm868
          %vm901 = vmand %vm836, %vm869
          %vm902 = vmand %vm837, %vm870
          %vm903 = vmand %vm838, %vm871
          %vm904 = vmand %vm839, %vm872
          %vm905 = vmand %vm840, %vm873
          %vm906 = vmand %vm841, %vm874
          %vm907 = vmand %vm842, %vm875
          %vm908 = vmand %vm843, %vm876
          %vm909 = vmand %vm844, %vm877
          %vm910 = vmand %vm845, %vm878
          %vm911 = vmand %vm846, %vm879
          %vm912 = vmand %vm847, %vm880
          %vm913 = vmand %vm848, %vm881
          %vm914 = vmand %vm849, %vm882
          %vm915 = vmand %vm850, %vm883
          %vm916 = vmand %vm851, %vm884
          %vm917 = vmand %vm852, %vm885
          %v918 = vld [vmem:[%s250] sm:$0xf]
          %v919 = vld [vmem:[%s250 + $0x4] sm:$0xf]
          %v920 = vld [vmem:[%s250 + $0x8] sm:$0xf]
          %v921 = vld [vmem:[%s250 + $0xc] sm:$0xf]
          %v922 = vld [vmem:[%s250 + $0x10] sm:$0xf]
          %v923 = vld [vmem:[%s250 + $0x14] sm:$0xf]
          %v924 = vld [vmem:[%s250 + $0x18] sm:$0xf]
          %v925 = vld [vmem:[%s250 + $0x1c] sm:$0xf]
          %v926 = vld [vmem:[%s250 + $0x20] sm:$0xf]
          %v927 = vld [vmem:[%s250 + $0x24] sm:$0xf]
          %v928 = vld [vmem:[%s250 + $0x28] sm:$0xf]
          %v929 = vld [vmem:[%s250 + $0x2c] sm:$0xf]
          %v930 = vld [vmem:[%s250 + $0x30] sm:$0xf]
          %v931 = vld [vmem:[%s250 + $0x34] sm:$0xf]
          %v932 = vld [vmem:[%s250 + $0x38] sm:$0xf]
          %v933 = vld [vmem:[%s250 + $0x3c] sm:$0xf]
          %v934 = vld [vmem:[%s250 + $0x40] sm:$0xf]
          %v935 = vld [vmem:[%s250 + $0x44] sm:$0xf]
          %v936 = vld [vmem:[%s250 + $0x48] sm:$0xf]
          %v937 = vld [vmem:[%s250 + $0x4c] sm:$0xf]
          %v938 = vld [vmem:[%s250 + $0x50] sm:$0xf]
          %v939 = vld [vmem:[%s250 + $0x54] sm:$0xf]
          %v940 = vld [vmem:[%s250 + $0x58] sm:$0xf]
          %v941 = vld [vmem:[%s250 + $0x5c] sm:$0xf]
          %v942 = vld [vmem:[%s250 + $0x60] sm:$0xf]
          %v943 = vld [vmem:[%s250 + $0x64] sm:$0xf]
          %v944 = vld [vmem:[%s250 + $0x68] sm:$0xf]
          %v945 = vld [vmem:[%s250 + $0x6c] sm:$0xf]
          %v946 = vld [vmem:[%s250 + $0x70] sm:$0xf]
          %v947 = vld [vmem:[%s250 + $0x74] sm:$0xf]
          %v948 = vld [vmem:[%s250 + $0x78] sm:$0xf]
          %v949 = vld [vmem:[%s250 + $0x7c] sm:$0xf]
          %v950 = vsel %vm886, 1, 0
          %v951 = vsel %vm887, 1, 0
          %v952 = vsel %vm888, 1, 0
          %v953 = vsel %vm889, 1, 0
          %v954 = vsel %vm890, 1, 0
          %v955 = vsel %vm891, 1, 0
          %v956 = vsel %vm892, 1, 0
          %v957 = vsel %vm893, 1, 0
          %v958 = vsel %vm894, 1, 0
          %v959 = vsel %vm895, 1, 0
          %v960 = vsel %vm896, 1, 0
          %v961 = vsel %vm897, 1, 0
          %v962 = vsel %vm898, 1, 0
          %v963 = vsel %vm899, 1, 0
          %v964 = vsel %vm900, 1, 0
          %v965 = vsel %vm901, 1, 0
          %v966 = vsel %vm902, 1, 0
          %v967 = vsel %vm903, 1, 0
          %v968 = vsel %vm904, 1, 0
          %v969 = vsel %vm905, 1, 0
          %v970 = vsel %vm906, 1, 0
          %v971 = vsel %vm907, 1, 0
          %v972 = vsel %vm908, 1, 0
          %v973 = vsel %vm909, 1, 0
          %v974 = vsel %vm910, 1, 0
          %v975 = vsel %vm911, 1, 0
          %v976 = vsel %vm912, 1, 0
          %v977 = vsel %vm913, 1, 0
          %v978 = vsel %vm914, 1, 0
          %v979 = vsel %vm915, 1, 0
          %v980 = vsel %vm916, 1, 0
          %v981 = vsel %vm917, 1, 0
          %vm982 = vcmp.eq.s32.totalorder %v950, 1
          %vm983 = vcmp.eq.s32.totalorder %v951, 1
          %vm984 = vcmp.eq.s32.totalorder %v952, 1
          %vm985 = vcmp.eq.s32.totalorder %v953, 1
          %vm986 = vcmp.eq.s32.totalorder %v954, 1
          %vm987 = vcmp.eq.s32.totalorder %v955, 1
          %vm988 = vcmp.eq.s32.totalorder %v956, 1
          %vm989 = vcmp.eq.s32.totalorder %v957, 1
          %vm990 = vcmp.eq.s32.totalorder %v958, 1
          %vm991 = vcmp.eq.s32.totalorder %v959, 1
          %vm992 = vcmp.eq.s32.totalorder %v960, 1
          %vm993 = vcmp.eq.s32.totalorder %v961, 1
          %vm994 = vcmp.eq.s32.totalorder %v962, 1
          %vm995 = vcmp.eq.s32.totalorder %v963, 1
          %vm996 = vcmp.eq.s32.totalorder %v964, 1
          %vm997 = vcmp.eq.s32.totalorder %v965, 1
          %vm998 = vcmp.eq.s32.totalorder %v966, 1
          %vm999 = vcmp.eq.s32.totalorder %v967, 1
          %vm1000 = vcmp.eq.s32.totalorder %v968, 1
          %vm1001 = vcmp.eq.s32.totalorder %v969, 1
          %vm1002 = vcmp.eq.s32.totalorder %v970, 1
          %vm1003 = vcmp.eq.s32.totalorder %v971, 1
          %vm1004 = vcmp.eq.s32.totalorder %v972, 1
          %vm1005 = vcmp.eq.s32.totalorder %v973, 1
          %vm1006 = vcmp.eq.s32.totalorder %v974, 1
          %vm1007 = vcmp.eq.s32.totalorder %v975, 1
          %vm1008 = vcmp.eq.s32.totalorder %v976, 1
          %vm1009 = vcmp.eq.s32.totalorder %v977, 1
          %vm1010 = vcmp.eq.s32.totalorder %v978, 1
          %vm1011 = vcmp.eq.s32.totalorder %v979, 1
          %vm1012 = vcmp.eq.s32.totalorder %v980, 1
          %vm1013 = vcmp.eq.s32.totalorder %v981, 1
          %vm1014 = vmpackc.low %vm982, %vm982
          %vm1015 = vmpackc.low %vm983, %vm983
          %vm1016 = vmpackc.low %vm984, %vm984
          %vm1017 = vmpackc.low %vm985, %vm985
          %vm1018 = vmpackc.low %vm986, %vm986
          %vm1019 = vmpackc.low %vm987, %vm987
          %vm1020 = vmpackc.low %vm988, %vm988
          %vm1021 = vmpackc.low %vm989, %vm989
          %vm1022 = vmpackc.low %vm990, %vm990
          %vm1023 = vmpackc.low %vm991, %vm991
          %vm1024 = vmpackc.low %vm992, %vm992
          %vm1025 = vmpackc.low %vm993, %vm993
          %vm1026 = vmpackc.low %vm994, %vm994
          %vm1027 = vmpackc.low %vm995, %vm995
          %vm1028 = vmpackc.low %vm996, %vm996
          %vm1029 = vmpackc.low %vm997, %vm997
          %vm1030 = vmpackc.low %vm998, %vm998
          %vm1031 = vmpackc.low %vm999, %vm999
          %vm1032 = vmpackc.low %vm1000, %vm1000
          %vm1033 = vmpackc.low %vm1001, %vm1001
          %vm1034 = vmpackc.low %vm1002, %vm1002
          %vm1035 = vmpackc.low %vm1003, %vm1003
          %vm1036 = vmpackc.low %vm1004, %vm1004
          %vm1037 = vmpackc.low %vm1005, %vm1005
          %vm1038 = vmpackc.low %vm1006, %vm1006
          %vm1039 = vmpackc.low %vm1007, %vm1007
          %vm1040 = vmpackc.low %vm1008, %vm1008
          %vm1041 = vmpackc.low %vm1009, %vm1009
          %vm1042 = vmpackc.low %vm1010, %vm1010
          %vm1043 = vmpackc.low %vm1011, %vm1011
          %vm1044 = vmpackc.low %vm1012, %vm1012
          %vm1045 = vmpackc.low %vm1013, %vm1013
          %v1046 = vsel %vm1014, %v918, 0
          %v1047 = vsel %vm1015, %v919, 0
          %v1048 = vsel %vm1016, %v920, 0
          %v1049 = vsel %vm1017, %v921, 0
          %v1050 = vsel %vm1018, %v922, 0
          %v1051 = vsel %vm1019, %v923, 0
          %v1052 = vsel %vm1020, %v924, 0
          %v1053 = vsel %vm1021, %v925, 0
          %v1054 = vsel %vm1022, %v926, 0
          %v1055 = vsel %vm1023, %v927, 0
          %v1056 = vsel %vm1024, %v928, 0
          %v1057 = vsel %vm1025, %v929, 0
          %v1058 = vsel %vm1026, %v930, 0
          %v1059 = vsel %vm1027, %v931, 0
          %v1060 = vsel %vm1028, %v932, 0
          %v1061 = vsel %vm1029, %v933, 0
          %v1062 = vsel %vm1030, %v934, 0
          %v1063 = vsel %vm1031, %v935, 0
          %v1064 = vsel %vm1032, %v936, 0
          %v1065 = vsel %vm1033, %v937, 0
          %v1066 = vsel %vm1034, %v938, 0
          %v1067 = vsel %vm1035, %v939, 0
          %v1068 = vsel %vm1036, %v940, 0
          %v1069 = vsel %vm1037, %v941, 0
          %v1070 = vsel %vm1038, %v942, 0
          %v1071 = vsel %vm1039, %v943, 0
          %v1072 = vsel %vm1040, %v944, 0
          %v1073 = vsel %vm1041, %v945, 0
          %v1074 = vsel %vm1042, %v946, 0
          %v1075 = vsel %vm1043, %v947, 0
          %v1076 = vsel %vm1044, %v948, 0
          %v1077 = vsel %vm1045, %v949, 0
          %v1078 = vld [vmem:[#allocation2] sm:$0xff]
          %v1079 = vld [vmem:[#allocation2 + $0x8] sm:$0xff]
          %v1080 = vld [vmem:[#allocation2 + $0x10] sm:$0xff]
          %v1081 = vld [vmem:[#allocation2 + $0x18] sm:$0xff]
          %v1082 = vld [vmem:[#allocation2 + $0x20] sm:$0xff]
          %v1083 = vld [vmem:[#allocation2 + $0x28] sm:$0xff]
          %v1084 = vld [vmem:[#allocation2 + $0x30] sm:$0xff]
          %v1085 = vld [vmem:[#allocation2 + $0x38] sm:$0xff]
          %v1086 = vld [vmem:[#allocation2 + $0x40] sm:$0xff]
          %v1087 = vld [vmem:[#allocation2 + $0x48] sm:$0xff]
          %v1088 = vld [vmem:[#allocation2 + $0x50] sm:$0xff]
          %v1089 = vld [vmem:[#allocation2 + $0x58] sm:$0xff]
          %v1090 = vld [vmem:[#allocation2 + $0x60] sm:$0xff]
          %v1091 = vld [vmem:[#allocation2 + $0x68] sm:$0xff]
          %v1092 = vld [vmem:[#allocation2 + $0x70] sm:$0xff]
          %v1093 = vld [vmem:[#allocation2 + $0x78] sm:$0xff]
          %v1094 = vld [vmem:[#allocation2 + $0x80] sm:$0xff]
          %v1095 = vld [vmem:[#allocation2 + $0x88] sm:$0xff]
          %v1096 = vld [vmem:[#allocation2 + $0x90] sm:$0xff]
          %v1097 = vld [vmem:[#allocation2 + $0x98] sm:$0xff]
          %v1098 = vld [vmem:[#allocation2 + $0xa0] sm:$0xff]
          %v1099 = vld [vmem:[#allocation2 + $0xa8] sm:$0xff]
          %v1100 = vld [vmem:[#allocation2 + $0xb0] sm:$0xff]
          %v1101 = vld [vmem:[#allocation2 + $0xb8] sm:$0xff]
          %v1102 = vld [vmem:[#allocation2 + $0xc0] sm:$0xff]
          %v1103 = vld [vmem:[#allocation2 + $0xc8] sm:$0xff]
          %v1104 = vld [vmem:[#allocation2 + $0xd0] sm:$0xff]
          %v1105 = vld [vmem:[#allocation2 + $0xd8] sm:$0xff]
          %v1106 = vld [vmem:[#allocation2 + $0xe0] sm:$0xff]
          %v1107 = vld [vmem:[#allocation2 + $0xe8] sm:$0xff]
          %v1108 = vld [vmem:[#allocation2 + $0xf0] sm:$0xff]
          %v1109 = vld [vmem:[#allocation2 + $0xf8] sm:$0xff]
          %v1110 = vld [vmem:[%s260] sm:$0xf]
          %v1111 = vld [vmem:[%s260 + $0x4] sm:$0xf]
          %v1112 = vld [vmem:[%s260 + $0x8] sm:$0xf]
          %v1113 = vld [vmem:[%s260 + $0xc] sm:$0xf]
          %v1114 = vld [vmem:[%s260 + $0x10] sm:$0xf]
          %v1115 = vld [vmem:[%s260 + $0x14] sm:$0xf]
          %v1116 = vld [vmem:[%s260 + $0x18] sm:$0xf]
          %v1117 = vld [vmem:[%s260 + $0x1c] sm:$0xf]
          %v1118 = vld [vmem:[%s260 + $0x20] sm:$0xf]
          %v1119 = vld [vmem:[%s260 + $0x24] sm:$0xf]
          %v1120 = vld [vmem:[%s260 + $0x28] sm:$0xf]
          %v1121 = vld [vmem:[%s260 + $0x2c] sm:$0xf]
          %v1122 = vld [vmem:[%s260 + $0x30] sm:$0xf]
          %v1123 = vld [vmem:[%s260 + $0x34] sm:$0xf]
          %v1124 = vld [vmem:[%s260 + $0x38] sm:$0xf]
          %v1125 = vld [vmem:[%s260 + $0x3c] sm:$0xf]
          %v1158 = vunpack.c.l.b16 %v1046
          %v1159 = vunpack.c.l.b16 %v1047
          %v1160 = vunpack.c.l.b16 %v1048
          %v1161 = vunpack.c.l.b16 %v1049
          %v1162 = vunpack.c.l.b16 %v1050
          %v1163 = vunpack.c.l.b16 %v1051
          %v1164 = vunpack.c.l.b16 %v1052
          %v1165 = vunpack.c.l.b16 %v1053
          %v1166 = vunpack.c.l.b16 %v1054
          %v1167 = vunpack.c.l.b16 %v1055
          %v1168 = vunpack.c.l.b16 %v1056
          %v1169 = vunpack.c.l.b16 %v1057
          %v1170 = vunpack.c.l.b16 %v1058
          %v1171 = vunpack.c.l.b16 %v1059
          %v1172 = vunpack.c.l.b16 %v1060
          %v1173 = vunpack.c.l.b16 %v1061
          %v1174 = vunpack.c.l.b16 %v1062
          %v1175 = vunpack.c.l.b16 %v1063
          %v1176 = vunpack.c.l.b16 %v1064
          %v1177 = vunpack.c.l.b16 %v1065
          %v1178 = vunpack.c.l.b16 %v1066
          %v1179 = vunpack.c.l.b16 %v1067
          %v1180 = vunpack.c.l.b16 %v1068
          %v1181 = vunpack.c.l.b16 %v1069
          %v1182 = vunpack.c.l.b16 %v1070
          %v1183 = vunpack.c.l.b16 %v1071
          %v1184 = vunpack.c.l.b16 %v1072
          %v1185 = vunpack.c.l.b16 %v1073
          %v1186 = vunpack.c.l.b16 %v1074
          %v1187 = vunpack.c.l.b16 %v1075
          %v1188 = vunpack.c.l.b16 %v1076
          %v1189 = vunpack.c.l.b16 %v1077
          %v1190 = vpack.c.b16 %v1159, %v1158
          %v1191 = vpack.c.b16 %v1161, %v1160
          %v1192 = vpack.c.b16 %v1163, %v1162
          %v1193 = vpack.c.b16 %v1165, %v1164
          %v1194 = vpack.c.b16 %v1167, %v1166
          %v1195 = vpack.c.b16 %v1169, %v1168
          %v1196 = vpack.c.b16 %v1171, %v1170
          %v1197 = vpack.c.b16 %v1173, %v1172
          %v1198 = vpack.c.b16 %v1175, %v1174
          %v1199 = vpack.c.b16 %v1177, %v1176
          %v1200 = vpack.c.b16 %v1179, %v1178
          %v1201 = vpack.c.b16 %v1181, %v1180
          %v1202 = vpack.c.b16 %v1183, %v1182
          %v1203 = vpack.c.b16 %v1185, %v1184
          %v1204 = vpack.c.b16 %v1187, %v1186
          %v1205 = vpack.c.b16 %v1189, %v1188
          %v1238 = vunpack.c.l.b16 %v1110
          %v1239 = vunpack.c.l.b16 %v1111
          %v1240 = vunpack.c.l.b16 %v1112
          %v1241 = vunpack.c.l.b16 %v1113
          %v1242 = vunpack.c.l.b16 %v1114
          %v1243 = vunpack.c.l.b16 %v1115
          %v1244 = vunpack.c.l.b16 %v1116
          %v1245 = vunpack.c.l.b16 %v1117
          %v1246 = vunpack.c.l.b16 %v1118
          %v1247 = vunpack.c.l.b16 %v1119
          %v1248 = vunpack.c.l.b16 %v1120
          %v1249 = vunpack.c.l.b16 %v1121
          %v1250 = vunpack.c.l.b16 %v1122
          %v1251 = vunpack.c.l.b16 %v1123
          %v1252 = vunpack.c.l.b16 %v1124
          %v1253 = vunpack.c.l.b16 %v1125
          %v1254 = vpack.c.b16 %v1239, %v1238
          %v1255 = vpack.c.b16 %v1241, %v1240
          %v1256 = vpack.c.b16 %v1243, %v1242
          %v1257 = vpack.c.b16 %v1245, %v1244
          %v1258 = vpack.c.b16 %v1247, %v1246
          %v1259 = vpack.c.b16 %v1249, %v1248
          %v1260 = vpack.c.b16 %v1251, %v1250
          %v1261 = vpack.c.b16 %v1253, %v1252
          %1270 = vmatpush.bf16.msra.mxu0 %v1261
          %1271 = vmatpush.bf16.msra.mxu0 %v1260
          %1272 = vmatpush.bf16.msra.mxu0 %v1259
          %1273 = vmatpush.bf16.msra.mxu0 %v1258
          %1274 = vmatpush.bf16.msra.mxu0 %v1257
          %1275 = vmatpush.bf16.msra.mxu0 %v1256
          %1276 = vmatpush.bf16.msra.mxu0 %v1255
          %1277 = vmatpush.bf16.msra.mxu0 %v1254
          %1278 = vmatmul.bf16.gmra.mxu0 %v1190
          %v1279 = vpop.f32.mrf.mxu0
          %v1280 = vadd.f32 0.0, %v1279
          %v1281 = vpop.f32.mrf.mxu0
          %v1282 = vadd.f32 0.0, %v1281
          %1283 = vmatmul.bf16.gmra.mxu0 %v1191
          %v1284 = vpop.f32.mrf.mxu0
          %v1285 = vadd.f32 0.0, %v1284
          %v1286 = vpop.f32.mrf.mxu0
          %v1287 = vadd.f32 0.0, %v1286
          %1288 = vmatmul.bf16.gmra.mxu0 %v1192
          %v1289 = vpop.f32.mrf.mxu0
          %v1290 = vadd.f32 0.0, %v1289
          %v1291 = vpop.f32.mrf.mxu0
          %v1292 = vadd.f32 0.0, %v1291
          %1293 = vmatmul.bf16.gmra.mxu0 %v1193
          %v1294 = vpop.f32.mrf.mxu0
          %v1295 = vadd.f32 0.0, %v1294
          %v1296 = vpop.f32.mrf.mxu0
          %v1297 = vadd.f32 0.0, %v1296
          %1298 = vmatmul.bf16.gmra.mxu0 %v1194
          %v1299 = vpop.f32.mrf.mxu0
          %v1300 = vadd.f32 0.0, %v1299
          %v1301 = vpop.f32.mrf.mxu0
          %v1302 = vadd.f32 0.0, %v1301
          %1303 = vmatmul.bf16.gmra.mxu0 %v1195
          %v1304 = vpop.f32.mrf.mxu0
          %v1305 = vadd.f32 0.0, %v1304
          %v1306 = vpop.f32.mrf.mxu0
          %v1307 = vadd.f32 0.0, %v1306
          %1308 = vmatmul.bf16.gmra.mxu0 %v1196
          %v1309 = vpop.f32.mrf.mxu0
          %v1310 = vadd.f32 0.0, %v1309
          %v1311 = vpop.f32.mrf.mxu0
          %v1312 = vadd.f32 0.0, %v1311
          %1313 = vmatmul.bf16.gmra.mxu0 %v1197
          %v1314 = vpop.f32.mrf.mxu0
          %v1315 = vadd.f32 0.0, %v1314
          %v1316 = vpop.f32.mrf.mxu0
          %v1317 = vadd.f32 0.0, %v1316
          %1318 = vmatmul.bf16.gmra.mxu0 %v1198
          %v1319 = vpop.f32.mrf.mxu0
          %v1320 = vadd.f32 0.0, %v1319
          %v1321 = vpop.f32.mrf.mxu0
          %v1322 = vadd.f32 0.0, %v1321
          %1323 = vmatmul.bf16.gmra.mxu0 %v1199
          %v1324 = vpop.f32.mrf.mxu0
          %v1325 = vadd.f32 0.0, %v1324
          %v1326 = vpop.f32.mrf.mxu0
          %v1327 = vadd.f32 0.0, %v1326
          %1328 = vmatmul.bf16.gmra.mxu0 %v1200
          %v1329 = vpop.f32.mrf.mxu0
          %v1330 = vadd.f32 0.0, %v1329
          %v1331 = vpop.f32.mrf.mxu0
          %v1332 = vadd.f32 0.0, %v1331
          %1333 = vmatmul.bf16.gmra.mxu0 %v1201
          %v1334 = vpop.f32.mrf.mxu0
          %v1335 = vadd.f32 0.0, %v1334
          %v1336 = vpop.f32.mrf.mxu0
          %v1337 = vadd.f32 0.0, %v1336
          %1338 = vmatmul.bf16.gmra.mxu0 %v1202
          %v1339 = vpop.f32.mrf.mxu0
          %v1340 = vadd.f32 0.0, %v1339
          %v1341 = vpop.f32.mrf.mxu0
          %v1342 = vadd.f32 0.0, %v1341
          %1343 = vmatmul.bf16.gmra.mxu0 %v1203
          %v1344 = vpop.f32.mrf.mxu0
          %v1345 = vadd.f32 0.0, %v1344
          %v1346 = vpop.f32.mrf.mxu0
          %v1347 = vadd.f32 0.0, %v1346
          %1348 = vmatmul.bf16.gmra.mxu0 %v1204
          %v1349 = vpop.f32.mrf.mxu0
          %v1350 = vadd.f32 0.0, %v1349
          %v1351 = vpop.f32.mrf.mxu0
          %v1352 = vadd.f32 0.0, %v1351
          %1353 = vmatmul.bf16.gmra.mxu0 %v1205
          %v1354 = vpop.f32.mrf.mxu0
          %v1355 = vadd.f32 0.0, %v1354
          %v1356 = vpop.f32.mrf.mxu0
          %v1357 = vadd.f32 0.0, %v1356
          %1358 = vdwg.mxu0
          %v1359 = vadd.f32 %v1078, %v1280
          %v1360 = vadd.f32 %v1079, %v1282
          %v1361 = vadd.f32 %v1080, %v1285
          %v1362 = vadd.f32 %v1081, %v1287
          %v1363 = vadd.f32 %v1082, %v1290
          %v1364 = vadd.f32 %v1083, %v1292
          %v1365 = vadd.f32 %v1084, %v1295
          %v1366 = vadd.f32 %v1085, %v1297
          %v1367 = vadd.f32 %v1086, %v1300
          %v1368 = vadd.f32 %v1087, %v1302
          %v1369 = vadd.f32 %v1088, %v1305
          %v1370 = vadd.f32 %v1089, %v1307
          %v1371 = vadd.f32 %v1090, %v1310
          %v1372 = vadd.f32 %v1091, %v1312
          %v1373 = vadd.f32 %v1092, %v1315
          %v1374 = vadd.f32 %v1093, %v1317
          %v1375 = vadd.f32 %v1094, %v1320
          %v1376 = vadd.f32 %v1095, %v1322
          %v1377 = vadd.f32 %v1096, %v1325
          %v1378 = vadd.f32 %v1097, %v1327
          %v1379 = vadd.f32 %v1098, %v1330
          %v1380 = vadd.f32 %v1099, %v1332
          %v1381 = vadd.f32 %v1100, %v1335
          %v1382 = vadd.f32 %v1101, %v1337
          %v1383 = vadd.f32 %v1102, %v1340
          %v1384 = vadd.f32 %v1103, %v1342
          %v1385 = vadd.f32 %v1104, %v1345
          %v1386 = vadd.f32 %v1105, %v1347
          %v1387 = vadd.f32 %v1106, %v1350
          %v1388 = vadd.f32 %v1107, %v1352
          %v1389 = vadd.f32 %v1108, %v1355
          %v1390 = vadd.f32 %v1109, %v1357
          %1391 = vst [vmem:[#allocation2] sm:$0xff] %v1359
          %1392 = vst [vmem:[#allocation2 + $0x8] sm:$0xff] %v1360
          %1393 = vst [vmem:[#allocation2 + $0x10] sm:$0xff] %v1361
          %1394 = vst [vmem:[#allocation2 + $0x18] sm:$0xff] %v1362
          %1395 = vst [vmem:[#allocation2 + $0x20] sm:$0xff] %v1363
          %1396 = vst [vmem:[#allocation2 + $0x28] sm:$0xff] %v1364
          %1397 = vst [vmem:[#allocation2 + $0x30] sm:$0xff] %v1365
          %1398 = vst [vmem:[#allocation2 + $0x38] sm:$0xff] %v1366
          %1399 = vst [vmem:[#allocation2 + $0x40] sm:$0xff] %v1367
          %1400 = vst [vmem:[#allocation2 + $0x48] sm:$0xff] %v1368
          %1401 = vst [vmem:[#allocation2 + $0x50] sm:$0xff] %v1369
          %1402 = vst [vmem:[#allocation2 + $0x58] sm:$0xff] %v1370
          %1403 = vst [vmem:[#allocation2 + $0x60] sm:$0xff] %v1371
          %1404 = vst [vmem:[#allocation2 + $0x68] sm:$0xff] %v1372
          %1405 = vst [vmem:[#allocation2 + $0x70] sm:$0xff] %v1373
          %1406 = vst [vmem:[#allocation2 + $0x78] sm:$0xff] %v1374
          %1407 = vst [vmem:[#allocation2 + $0x80] sm:$0xff] %v1375
          %1408 = vst [vmem:[#allocation2 + $0x88] sm:$0xff] %v1376
          %1409 = vst [vmem:[#allocation2 + $0x90] sm:$0xff] %v1377
          %1410 = vst [vmem:[#allocation2 + $0x98] sm:$0xff] %v1378
          %1411 = vst [vmem:[#allocation2 + $0xa0] sm:$0xff] %v1379
          %1412 = vst [vmem:[#allocation2 + $0xa8] sm:$0xff] %v1380
          %1413 = vst [vmem:[#allocation2 + $0xb0] sm:$0xff] %v1381
          %1414 = vst [vmem:[#allocation2 + $0xb8] sm:$0xff] %v1382
          %1415 = vst [vmem:[#allocation2 + $0xc0] sm:$0xff] %v1383
          %1416 = vst [vmem:[#allocation2 + $0xc8] sm:$0xff] %v1384
          %1417 = vst [vmem:[#allocation2 + $0xd0] sm:$0xff] %v1385
          %1418 = vst [vmem:[#allocation2 + $0xd8] sm:$0xff] %v1386
          %1419 = vst [vmem:[#allocation2 + $0xe0] sm:$0xff] %v1387
          %1420 = vst [vmem:[#allocation2 + $0xe8] sm:$0xff] %v1388
          %1421 = vst [vmem:[#allocation2 + $0xf0] sm:$0xff] %v1389
          %1422 = vst [vmem:[#allocation2 + $0xf8] sm:$0xff] %v1390
        $region48: #{tpu_custom_call.1} parent=27 // pred_fallthru
          _
        %p1423 = pnand %p301, %p313
        %p1424 = pneg %p1423
        // Predicated region
        $region49: #{tpu_custom_call.1} parent=27 // pred_check
          _
        $region50: #{tpu_custom_call.1} parent=27 // pred_check_branch
          %1426 = sbr.rel (%p1423) target = $region52
        $region51: #{tpu_custom_call.1} parent=27 // pred_region
          %v1427 = vld [vmem:[#allocation2] sm:$0xff]
          %v1428 = vld [vmem:[#allocation2 + $0x8] sm:$0xff]
          %v1429 = vld [vmem:[#allocation2 + $0x10] sm:$0xff]
          %v1430 = vld [vmem:[#allocation2 + $0x18] sm:$0xff]
          %v1431 = vld [vmem:[#allocation2 + $0x20] sm:$0xff]
          %v1432 = vld [vmem:[#allocation2 + $0x28] sm:$0xff]
          %v1433 = vld [vmem:[#allocation2 + $0x30] sm:$0xff]
          %v1434 = vld [vmem:[#allocation2 + $0x38] sm:$0xff]
          %v1435 = vld [vmem:[#allocation2 + $0x40] sm:$0xff]
          %v1436 = vld [vmem:[#allocation2 + $0x48] sm:$0xff]
          %v1437 = vld [vmem:[#allocation2 + $0x50] sm:$0xff]
          %v1438 = vld [vmem:[#allocation2 + $0x58] sm:$0xff]
          %v1439 = vld [vmem:[#allocation2 + $0x60] sm:$0xff]
          %v1440 = vld [vmem:[#allocation2 + $0x68] sm:$0xff]
          %v1441 = vld [vmem:[#allocation2 + $0x70] sm:$0xff]
          %v1442 = vld [vmem:[#allocation2 + $0x78] sm:$0xff]
          %v1443 = vld [vmem:[#allocation2 + $0x80] sm:$0xff]
          %v1444 = vld [vmem:[#allocation2 + $0x88] sm:$0xff]
          %v1445 = vld [vmem:[#allocation2 + $0x90] sm:$0xff]
          %v1446 = vld [vmem:[#allocation2 + $0x98] sm:$0xff]
          %v1447 = vld [vmem:[#allocation2 + $0xa0] sm:$0xff]
          %v1448 = vld [vmem:[#allocation2 + $0xa8] sm:$0xff]
          %v1449 = vld [vmem:[#allocation2 + $0xb0] sm:$0xff]
          %v1450 = vld [vmem:[#allocation2 + $0xb8] sm:$0xff]
          %v1451 = vld [vmem:[#allocation2 + $0xc0] sm:$0xff]
          %v1452 = vld [vmem:[#allocation2 + $0xc8] sm:$0xff]
          %v1453 = vld [vmem:[#allocation2 + $0xd0] sm:$0xff]
          %v1454 = vld [vmem:[#allocation2 + $0xd8] sm:$0xff]
          %v1455 = vld [vmem:[#allocation2 + $0xe0] sm:$0xff]
          %v1456 = vld [vmem:[#allocation2 + $0xe8] sm:$0xff]
          %v1457 = vld [vmem:[#allocation2 + $0xf0] sm:$0xff]
          %v1458 = vld [vmem:[#allocation2 + $0xf8] sm:$0xff]
          %1459 = vst [vmem:[%s286] sm:$0xff] %v1427
          %1460 = vst [vmem:[%s286 + $0x8] sm:$0xff] %v1428
          %1461 = vst [vmem:[%s286 + $0x10] sm:$0xff] %v1429
          %1462 = vst [vmem:[%s286 + $0x18] sm:$0xff] %v1430
          %1463 = vst [vmem:[%s286 + $0x20] sm:$0xff] %v1431
          %1464 = vst [vmem:[%s286 + $0x28] sm:$0xff] %v1432
          %1465 = vst [vmem:[%s286 + $0x30] sm:$0xff] %v1433
          %1466 = vst [vmem:[%s286 + $0x38] sm:$0xff] %v1434
          %1467 = vst [vmem:[%s286 + $0x40] sm:$0xff] %v1435
          %1468 = vst [vmem:[%s286 + $0x48] sm:$0xff] %v1436
          %1469 = vst [vmem:[%s286 + $0x50] sm:$0xff] %v1437
          %1470 = vst [vmem:[%s286 + $0x58] sm:$0xff] %v1438
          %1471 = vst [vmem:[%s286 + $0x60] sm:$0xff] %v1439
          %1472 = vst [vmem:[%s286 + $0x68] sm:$0xff] %v1440
          %1473 = vst [vmem:[%s286 + $0x70] sm:$0xff] %v1441
          %1474 = vst [vmem:[%s286 + $0x78] sm:$0xff] %v1442
          %1475 = vst [vmem:[%s286 + $0x80] sm:$0xff] %v1443
          %1476 = vst [vmem:[%s286 + $0x88] sm:$0xff] %v1444
          %1477 = vst [vmem:[%s286 + $0x90] sm:$0xff] %v1445
          %1478 = vst [vmem:[%s286 + $0x98] sm:$0xff] %v1446
          %1479 = vst [vmem:[%s286 + $0xa0] sm:$0xff] %v1447
          %1480 = vst [vmem:[%s286 + $0xa8] sm:$0xff] %v1448
          %1481 = vst [vmem:[%s286 + $0xb0] sm:$0xff] %v1449
          %1482 = vst [vmem:[%s286 + $0xb8] sm:$0xff] %v1450
          %1483 = vst [vmem:[%s286 + $0xc0] sm:$0xff] %v1451
          %1484 = vst [vmem:[%s286 + $0xc8] sm:$0xff] %v1452
          %1485 = vst [vmem:[%s286 + $0xd0] sm:$0xff] %v1453
          %1486 = vst [vmem:[%s286 + $0xd8] sm:$0xff] %v1454
          %1487 = vst [vmem:[%s286 + $0xe0] sm:$0xff] %v1455
          %1488 = vst [vmem:[%s286 + $0xe8] sm:$0xff] %v1456
          %1489 = vst [vmem:[%s286 + $0xf0] sm:$0xff] %v1457
          %1490 = vst [vmem:[%s286 + $0xf8] sm:$0xff] %v1458
        $region52: #{tpu_custom_call.1} parent=27 // pred_fallthru
          _
        %s1491 = sand.u32 %s150, 1
        %s1492 = scalar_lea.sflag [#allocation10], %s1491
        %s1493 = sand.u32 %s150, 1
        %s1494 = smul.addr %s1493, 256
        %s1495 = scalar_lea.vmem [#allocation13], %s1494
        // Predicated region
        $region53: #{tpu_custom_call.1} parent=27 // pred_check
          %p1496 = pneg %p160
        $region54: #{tpu_custom_call.1} parent=27 // pred_check_branch
          %1498 = sbr.rel (%p1496) target = $region56
        $region55: #{tpu_custom_call.1} parent=27 // pred_region
          %s1499 = sld [smem:[#allocation6 + %s51]]
          %s1500 = smul.u32 32, %s1499
          %1502 = vsyncadd %s1492, 0
          %s1503 = smul.addr %s1500, 2
          %s1504 = sadd.s32 %s50, %s1503
          %s1505 = smul.addr %s1504, 8
          %s1506 = scalar_lea.hbm %s6, %s1505
          %s1507 = sshll.u32 %s1495, 4
          %s1508 = int_to_ptr.vmem [resolvable:$true] %s1507
          %s1509 = sshll.u32 %s1506, 4
          %s1510 = int_to_ptr.hbm [resolvable:$true] %s1509
          %1515 = dma.vmem_to_hbm [thread:$0]  %s1508, 4096, %s1510, %s1492, 128, 256, 8
        $region56: #{tpu_custom_call.1} parent=27 // pred_fallthru
          _
      $region28: #{tpu_custom_call.1} parent=5 // pred_fallthru
        _
      %p1516 = scmp.le.s32.totalorder 2, %s40
      // Predicated region
      $region57: #{tpu_custom_call.1} parent=5 // pred_check
        %p1517 = pneg %p1516
      $region58: #{tpu_custom_call.1} parent=5 // pred_check_branch
        %1519 = sbr.rel (%p1517) target = $region60
      $region59: #{tpu_custom_call.1} parent=5 // pred_region
        %s1520 = ssub.s32 %s40, 2
        // Predicated region
        $region61: #{tpu_custom_call.1} parent=59 // pred_check
          %p1521 = pneg %p166
        $region62: #{tpu_custom_call.1} parent=59 // pred_check_branch
          %1523 = sbr.rel (%p1521) target = $region64
        $region63: #{tpu_custom_call.1} parent=59 // pred_region
          %s1524 = sand.u32 %s151, 1
          %s1525 = scalar_lea.sflag [#allocation10], %s1524
          %s1526 = sand.u32 %s151, 1
          %s1527 = smul.addr %s1526, 256
          %s1528 = scalar_lea.vmem [#allocation13], %s1527
          %1530 = dma.done %s1525, 4096
        $region64: #{tpu_custom_call.1} parent=59 // pred_fallthru
          _
      $region60: #{tpu_custom_call.1} parent=5 // pred_fallthru
        _
    $region6: #{tpu_custom_call.1} parent=1 // loop_footer
      %s44 = sadd.s32 1, %s40
    $region7: #{tpu_custom_call.1} parent=1 // loop_footer_branch
      %39 = sbr.rel target = $region3
    $region8: #{tpu_custom_call.1} parent=1 // loop_exit
      _
    %1531 = vsyncpa [#allocation9], 1
    %s1532 = scalar_lea.sflag [#allocation9], 1
    %1533 = vsyncpa %s1532, 1
    %1534 = vsyncpa [#allocation12], 1
    %s1535 = scalar_lea.sflag [#allocation12], 1
    %1536 = vsyncpa %s1535, 1
    %1537 = vsyncpa [#allocation10], 1
    %s1538 = scalar_lea.sflag [#allocation10], 1
    %1539 = vsyncpa %s1538, 1

</llo_original>
